<compile_context>
chip_gen: v5e
topology: v5e:2x2
jax: 0.10.0
libtpu: 0.0.40
codegen_flags: <defaults>
</compile_context>

<pallas_src>
import functools

import jax
import jax.numpy as jnp
import numpy as np
from jax.experimental import pallas as pl
from jax.experimental.pallas import tpu as pltpu


# ----------------------------- Pallas kernel --------------------------------

def _vime_self_kernel(
    x_ref,
    we_ref, be_ref,          # encoder                     (dim, dim), (1, dim)
    w1_ref, b1_ref,          # fused L1  [w1m | w1f]       (dim, 2*hid1)
    wv_ref, bv_ref,          # blockdiag(Wv, Wv)           (2*hid1, 2*hid1)
    wo_ref, bo_ref,          # blockdiag(Wo, Wo)           (2*hid1, 2*hid1)
    w2_ref, b2_ref,          # blockdiag(w2m, w2f)         (2*hid1, 2*hid2)
    w3_ref, b3_ref,          # blockdiag(w3m, w3f)         (2*hid2, 2*dim)
    out_ref,                 # fused output [mask || feat] (rows, 2*dim)
    *,
    compute_dtype,
):
    def leaky(z):  # nn.LeakyReLU default negative_slope = 0.01
        return jnp.where(z >= 0, z, 0.01 * z)

    def linear(z, w_ref, b_ref):
        # matmul inputs may be bf16 (weights pre-cast in wrapper); accumulate
        # in f32 and keep all elementwise math in f32.
        acc = jnp.dot(z.astype(compute_dtype), w_ref[...],
                      preferred_element_type=jnp.float32)
        return acc + b_ref[...]

    x = x_ref[...]

    # encoder
    h = leaky(linear(x, we_ref, be_ref))                 # (rows, dim)

    # fused mask+feat estimators (128-wide activations)
    a1 = leaky(linear(h, w1_ref, b1_ref))                # (rows, 2*hid1)
    # shared MHA, seq len == 1  ->  out_proj(v_proj(.))  (exact)
    v = linear(a1, wv_ref, bv_ref)                       # (rows, 2*hid1)
    at = linear(v, wo_ref, bo_ref)                       # (rows, 2*hid1)
    a2 = leaky(linear(at, w2_ref, b2_ref))               # (rows, 2*hid2)
    out_ref[...] = jax.nn.sigmoid(linear(a2, w3_ref, b3_ref))   # (rows, 2*dim)


# ------------------------------ wrapper --------------------------------------

def _blockdiag(a, b):
    z01 = jnp.zeros((a.shape[0], b.shape[1]), a.dtype)
    z10 = jnp.zeros((b.shape[0], a.shape[1]), a.dtype)
    return jnp.concatenate(
        [jnp.concatenate([a, z01], axis=1),
         jnp.concatenate([z10, b], axis=1)], axis=0)


def _fuse_params(p, weight_dtype):
    """Fuse the mask/feat branches into block-diagonal / concatenated weights."""
    cat = lambda a, b: jnp.concatenate([a, b], axis=1)
    fw = lambda w: w.astype(weight_dtype)      # matmul operands
    fb = lambda b: b.astype(jnp.float32)       # biases stay f32
    fused = [
        fw(p["we"]), fb(p["be"]),
        fw(cat(p["w1m"], p["w1f"])), fb(cat(p["b1m"], p["b1f"])),
        fw(_blockdiag(p["wv"], p["wv"])), fb(cat(p["bv"], p["bv"])),
        fw(_blockdiag(p["wo"], p["wo"])), fb(cat(p["bo"], p["bo"])),
        fw(_blockdiag(p["w2m"], p["w2f"])), fb(cat(p["b2m"], p["b2f"])),
        fw(_blockdiag(p["w3m"], p["w3f"])), fb(cat(p["b3m"], p["b3f"])),
    ]
    return fused


def vime_self_forward(x, params, *, block_rows=256, use_bf16=False):
    """x: (N, dim) float32.  params: dict of pre-transposed (in, out) weights.

    Returns (mask_output, feature_output), each (N, dim) float32.
    """
    n, dim = x.shape
    block_rows = min(block_rows, n)
    assert n % block_rows == 0, "pad batch to a multiple of block_rows"
    assert block_rows % 8 == 0, "block_rows must be a multiple of 8 (f32 sublane)"

    weight_dtype = jnp.bfloat16 if use_bf16 else jnp.float32
    fused = _fuse_params(params, weight_dtype)

    x_spec = pl.BlockSpec((block_rows, dim), lambda i: (i, 0))
    # Whole-array blocks for the (grid-invariant) fused parameters.
    param_specs = [pl.BlockSpec(p.shape, lambda i: (0, 0)) for p in fused]
    out_spec = pl.BlockSpec((block_rows, 2 * dim), lambda i: (i, 0))

    kernel = functools.partial(_vime_self_kernel, compute_dtype=weight_dtype)

    fused_out = pl.pallas_call(
        kernel,
        out_shape=jax.ShapeDtypeStruct((n, 2 * dim), jnp.float32),
        grid_spec=pltpu.PrefetchScalarGridSpec(
            num_scalar_prefetch=0,
            grid=(n // block_rows,),
            in_specs=[x_spec] + param_specs,
            out_specs=out_spec,
        ),
        compiler_params=pltpu.CompilerParams(
            dimension_semantics=("parallel",)),
    )(x, *fused)

    return fused_out[:, :dim], fused_out[:, dim:]


# ------------------------- parameter construction ----------------------------

def _linear_params(key, fan_in, fan_out):
    """PyTorch-style uniform(-1/sqrt(fan_in), 1/sqrt(fan_in)); stored as (in,out)."""
    kw, kb = jax.random.split(key)
    bound = 1.0 / np.sqrt(fan_in)
    w = jax.random.uniform(kw, (fan_in, fan_out), jnp.float32, -bound, bound)
    b = jax.random.uniform(kb, (1, fan_out), jnp.float32, -bound, bound)
    return w, b


def make_params(key, dim, hid1, hid2):
    keys = jax.random.split(key, 9)
    p = {}
    p["we"], p["be"] = _linear_params(keys[0], dim, dim)          # encoder
    p["w1m"], p["b1m"] = _linear_params(keys[1], dim, hid1)       # mask est L1
    p["w1f"], p["b1f"] = _linear_params(keys[2], dim, hid1)       # feat est L1
    p["wv"], p["bv"] = _linear_params(keys[3], hid1, hid1)        # shared MHA V proj
    p["wo"], p["bo"] = _linear_params(keys[4], hid1, hid1)        # shared MHA out proj
    p["w2m"], p["b2m"] = _linear_params(keys[5], hid1, hid2)      # mask est L2
    p["w3m"], p["b3m"] = _linear_params(keys[6], hid2, dim)       # mask est L3
    p["w2f"], p["b2f"] = _linear_params(keys[7], hid1, hid2)      # feat est L2
    p["w3f"], p["b3f"] = _linear_params(keys[8], hid2, dim)       # feat est L3
    return p


# ------------------------------ reference ------------------------------------

def vime_self_reference(x, p):
    leaky = lambda z: jnp.where(z >= 0, z, 0.01 * z)
    lin = lambda z, w, b: z @ w + b
    h = leaky(lin(x, p["we"], p["be"]))
    attn = lambda z: lin(lin(z, p["wv"], p["bv"]), p["wo"], p["bo"])

    def est(z, w1, b1, w2, b2, w3, b3):
        a1 = leaky(lin(z, w1, b1))
        a2 = leaky(lin(attn(a1), w2, b2))
        return jax.nn.sigmoid(lin(a2, w3, b3))

    m = est(h, p["w1m"], p["b1m"], p["w2m"], p["b2m"], p["w3m"], p["b3m"])
    f = est(h, p["w1f"], p["b1f"], p["w2f"], p["b2f"], p["w3f"], p["b3f"])
    return m, f


# --------------------------------- main ---------------------------------------

if __name__ == "__main__":
    # num_heads=4 drops out of the math: with seq len == 1 the per-head softmax
    # is identically 1 and MHA reduces to out_proj(v_proj(.)).
    N, DIM, HID1, HID2 = 512, 32, 64, 64

    key = jax.random.PRNGKey(0)
    kx, kp = jax.random.split(key)
    x = jax.random.normal(kx, (N, DIM), jnp.float32)
    params = make_params(kp, DIM, HID1, HID2)

    mask_ref, feat_ref = vime_self_reference(x, params)

    # f32 path: exact match with the reference.
    mask_out, feat_out = vime_self_forward(x, params, block_rows=256)
    jax.block_until_ready((mask_out, feat_out))
    np.testing.assert_allclose(np.asarray(mask_out), np.asarray(mask_ref),
                               rtol=1e-5, atol=1e-5)
    np.testing.assert_allclose(np.asarray(feat_out), np.asarray(feat_ref),
                               rtol=1e-5, atol=1e-5)

    # bf16-matmul path (full-rate MXU on v6e/v7x); f32 accumulation & f32
    # elementwise math, so outputs stay close to the f32 reference.
    mask_bf, feat_bf = vime_self_forward(x, params, block_rows=256,
                                         use_bf16=True)
    jax.block_until_ready((mask_bf, feat_bf))
    np.testing.assert_allclose(np.asarray(mask_bf), np.asarray(mask_ref),
                               rtol=5e-2, atol=5e-2)
    np.testing.assert_allclose(np.asarray(feat_bf), np.asarray(feat_ref),
                               rtol=5e-2, atol=5e-2)

    print("KERNEL_OK")
</pallas_src>

<mosaic_0001>
module attributes {stable_mosaic.version = 11 : i64} {
  func.func @_vime_self_kernel(%arg0: i32, %arg1: memref<256x32xf32, #tpu.memory_space<vmem>>, %arg2: memref<32x32xf32, #tpu.memory_space<vmem>>, %arg3: memref<1x32xf32, #tpu.memory_space<vmem>>, %arg4: memref<32x128xf32, #tpu.memory_space<vmem>>, %arg5: memref<1x128xf32, #tpu.memory_space<vmem>>, %arg6: memref<128x128xf32, #tpu.memory_space<vmem>>, %arg7: memref<1x128xf32, #tpu.memory_space<vmem>>, %arg8: memref<128x128xf32, #tpu.memory_space<vmem>>, %arg9: memref<1x128xf32, #tpu.memory_space<vmem>>, %arg10: memref<128x128xf32, #tpu.memory_space<vmem>>, %arg11: memref<1x128xf32, #tpu.memory_space<vmem>>, %arg12: memref<128x64xf32, #tpu.memory_space<vmem>>, %arg13: memref<1x64xf32, #tpu.memory_space<vmem>>, %arg14: memref<256x64xf32, #tpu.memory_space<vmem>>) attributes {dimension_semantics = [#tpu.dimension_semantics<parallel>], iteration_bounds = array<i64: 2>, scalar_prefetch = 0 : i64, scratch_operands = 0 : i64, tpu.core_type = #tpu.core_type<tc>, window_params = [{transform_indices = @transform_0, window_bounds = array<i64: 256, 32>}, {pipeline_mode = #tpu.pipeline_mode<synchronous>, transform_indices = @transform_1, window_bounds = array<i64: 32, 32>}, {pipeline_mode = #tpu.pipeline_mode<synchronous>, transform_indices = @transform_2, window_bounds = array<i64: 1, 32>}, {pipeline_mode = #tpu.pipeline_mode<synchronous>, transform_indices = @transform_3, window_bounds = array<i64: 32, 128>}, {pipeline_mode = #tpu.pipeline_mode<synchronous>, transform_indices = @transform_4, window_bounds = array<i64: 1, 128>}, {pipeline_mode = #tpu.pipeline_mode<synchronous>, transform_indices = @transform_5, window_bounds = array<i64: 128, 128>}, {pipeline_mode = #tpu.pipeline_mode<synchronous>, transform_indices = @transform_6, window_bounds = array<i64: 1, 128>}, {pipeline_mode = #tpu.pipeline_mode<synchronous>, transform_indices = @transform_7, window_bounds = array<i64: 128, 128>}, {pipeline_mode = #tpu.pipeline_mode<synchronous>, transform_indices = @transform_8, window_bounds = array<i64: 1, 128>}, {pipeline_mode = #tpu.pipeline_mode<synchronous>, transform_indices = @transform_9, window_bounds = array<i64: 128, 128>}, {pipeline_mode = #tpu.pipeline_mode<synchronous>, transform_indices = @transform_10, window_bounds = array<i64: 1, 128>}, {pipeline_mode = #tpu.pipeline_mode<synchronous>, transform_indices = @transform_11, window_bounds = array<i64: 128, 64>}, {pipeline_mode = #tpu.pipeline_mode<synchronous>, transform_indices = @transform_12, window_bounds = array<i64: 1, 64>}, {transform_indices = @transform_13, window_bounds = array<i64: 256, 64>}]} {
    %c0 = arith.constant 0 : index
    %c0_0 = arith.constant 0 : index
    %0 = vector.load %arg1[%c0, %c0_0] : memref<256x32xf32, #tpu.memory_space<vmem>>, vector<256x32xf32>
    %c0_1 = arith.constant 0 : index
    %c0_2 = arith.constant 0 : index
    %1 = vector.load %arg2[%c0_1, %c0_2] : memref<32x32xf32, #tpu.memory_space<vmem>>, vector<32x32xf32>
    %cst = arith.constant dense<0.000000e+00> : vector<256x32xf32>
    %2 = tpu.matmul %0, %1, %cst {dimension_numbers = #tpu.dot_dimension_numbers<[1], [0], [0], [1], [0, 0, 1, 1], [], []>} : vector<256x32xf32>, vector<32x32xf32>, vector<256x32xf32> -> vector<256x32xf32>
    %c0_3 = arith.constant 0 : index
    %c0_4 = arith.constant 0 : index
    %3 = vector.load %arg3[%c0_3, %c0_4] : memref<1x32xf32, #tpu.memory_space<vmem>>, vector<1x32xf32>
    %4 = vector.broadcast %3 : vector<1x32xf32> to vector<256x32xf32>
    %5 = arith.addf %2, %4 : vector<256x32xf32>
    %cst_5 = arith.constant 0.000000e+00 : f32
    %6 = vector.broadcast %cst_5 : f32 to vector<256x32xf32>
    %7 = arith.cmpf oge, %5, %6 : vector<256x32xf32>
    %cst_6 = arith.constant 0.00999999977 : f32
    %8 = vector.broadcast %cst_6 : f32 to vector<256x32xf32>
    %9 = arith.mulf %8, %5 : vector<256x32xf32>
    %10 = arith.select %7, %5, %9 : vector<256x32xi1>, vector<256x32xf32>
    %c0_7 = arith.constant 0 : index
    %c0_8 = arith.constant 0 : index
    %11 = vector.load %arg4[%c0_7, %c0_8] : memref<32x128xf32, #tpu.memory_space<vmem>>, vector<32x128xf32>
    %cst_9 = arith.constant dense<0.000000e+00> : vector<256x128xf32>
    %12 = tpu.matmul %10, %11, %cst_9 {dimension_numbers = #tpu.dot_dimension_numbers<[1], [0], [0], [1], [0, 0, 1, 1], [], []>} : vector<256x32xf32>, vector<32x128xf32>, vector<256x128xf32> -> vector<256x128xf32>
    %c0_10 = arith.constant 0 : index
    %c0_11 = arith.constant 0 : index
    %13 = vector.load %arg5[%c0_10, %c0_11] : memref<1x128xf32, #tpu.memory_space<vmem>>, vector<1x128xf32>
    %14 = vector.broadcast %13 : vector<1x128xf32> to vector<256x128xf32>
    %15 = arith.addf %12, %14 : vector<256x128xf32>
    %cst_12 = arith.constant 0.000000e+00 : f32
    %16 = vector.broadcast %cst_12 : f32 to vector<256x128xf32>
    %17 = arith.cmpf oge, %15, %16 : vector<256x128xf32>
    %cst_13 = arith.constant 0.00999999977 : f32
    %18 = vector.broadcast %cst_13 : f32 to vector<256x128xf32>
    %19 = arith.mulf %18, %15 : vector<256x128xf32>
    %20 = arith.select %17, %15, %19 : vector<256x128xi1>, vector<256x128xf32>
    %c0_14 = arith.constant 0 : index
    %c0_15 = arith.constant 0 : index
    %21 = vector.load %arg6[%c0_14, %c0_15] : memref<128x128xf32, #tpu.memory_space<vmem>>, vector<128x128xf32>
    %cst_16 = arith.constant dense<0.000000e+00> : vector<256x128xf32>
    %22 = tpu.matmul %20, %21, %cst_16 {dimension_numbers = #tpu.dot_dimension_numbers<[1], [0], [0], [1], [0, 0, 1, 1], [], []>} : vector<256x128xf32>, vector<128x128xf32>, vector<256x128xf32> -> vector<256x128xf32>
    %c0_17 = arith.constant 0 : index
    %c0_18 = arith.constant 0 : index
    %23 = vector.load %arg7[%c0_17, %c0_18] : memref<1x128xf32, #tpu.memory_space<vmem>>, vector<1x128xf32>
    %24 = vector.broadcast %23 : vector<1x128xf32> to vector<256x128xf32>
    %25 = arith.addf %22, %24 : vector<256x128xf32>
    %c0_19 = arith.constant 0 : index
    %c0_20 = arith.constant 0 : index
    %26 = vector.load %arg8[%c0_19, %c0_20] : memref<128x128xf32, #tpu.memory_space<vmem>>, vector<128x128xf32>
    %cst_21 = arith.constant dense<0.000000e+00> : vector<256x128xf32>
    %27 = tpu.matmul %25, %26, %cst_21 {dimension_numbers = #tpu.dot_dimension_numbers<[1], [0], [0], [1], [0, 0, 1, 1], [], []>} : vector<256x128xf32>, vector<128x128xf32>, vector<256x128xf32> -> vector<256x128xf32>
    %c0_22 = arith.constant 0 : index
    %c0_23 = arith.constant 0 : index
    %28 = vector.load %arg9[%c0_22, %c0_23] : memref<1x128xf32, #tpu.memory_space<vmem>>, vector<1x128xf32>
    %29 = vector.broadcast %28 : vector<1x128xf32> to vector<256x128xf32>
    %30 = arith.addf %27, %29 : vector<256x128xf32>
    %c0_24 = arith.constant 0 : index
    %c0_25 = arith.constant 0 : index
    %31 = vector.load %arg10[%c0_24, %c0_25] : memref<128x128xf32, #tpu.memory_space<vmem>>, vector<128x128xf32>
    %cst_26 = arith.constant dense<0.000000e+00> : vector<256x128xf32>
    %32 = tpu.matmul %30, %31, %cst_26 {dimension_numbers = #tpu.dot_dimension_numbers<[1], [0], [0], [1], [0, 0, 1, 1], [], []>} : vector<256x128xf32>, vector<128x128xf32>, vector<256x128xf32> -> vector<256x128xf32>
    %c0_27 = arith.constant 0 : index
    %c0_28 = arith.constant 0 : index
    %33 = vector.load %arg11[%c0_27, %c0_28] : memref<1x128xf32, #tpu.memory_space<vmem>>, vector<1x128xf32>
    %34 = vector.broadcast %33 : vector<1x128xf32> to vector<256x128xf32>
    %35 = arith.addf %32, %34 : vector<256x128xf32>
    %cst_29 = arith.constant 0.000000e+00 : f32
    %36 = vector.broadcast %cst_29 : f32 to vector<256x128xf32>
    %37 = arith.cmpf oge, %35, %36 : vector<256x128xf32>
    %cst_30 = arith.constant 0.00999999977 : f32
    %38 = vector.broadcast %cst_30 : f32 to vector<256x128xf32>
    %39 = arith.mulf %38, %35 : vector<256x128xf32>
    %40 = arith.select %37, %35, %39 : vector<256x128xi1>, vector<256x128xf32>
    %c0_31 = arith.constant 0 : index
    %c0_32 = arith.constant 0 : index
    %41 = vector.load %arg12[%c0_31, %c0_32] : memref<128x64xf32, #tpu.memory_space<vmem>>, vector<128x64xf32>
    %cst_33 = arith.constant dense<0.000000e+00> : vector<256x64xf32>
    %42 = tpu.matmul %40, %41, %cst_33 {dimension_numbers = #tpu.dot_dimension_numbers<[1], [0], [0], [1], [0, 0, 1, 1], [], []>} : vector<256x128xf32>, vector<128x64xf32>, vector<256x64xf32> -> vector<256x64xf32>
    %c0_34 = arith.constant 0 : index
    %c0_35 = arith.constant 0 : index
    %43 = vector.load %arg13[%c0_34, %c0_35] : memref<1x64xf32, #tpu.memory_space<vmem>>, vector<1x64xf32>
    %44 = vector.broadcast %43 : vector<1x64xf32> to vector<256x64xf32>
    %45 = arith.addf %42, %44 : vector<256x64xf32>
    %46 = arith.negf %45 : vector<256x64xf32>
    %47 = math.exp %46 : vector<256x64xf32>
    %cst_36 = arith.constant 1.000000e+00 : f32
    %48 = vector.broadcast %cst_36 : f32 to vector<256x64xf32>
    %49 = arith.addf %48, %47 : vector<256x64xf32>
    %50 = arith.divf %48, %49 : vector<256x64xf32>
    %c0_37 = arith.constant 0 : index
    %c0_38 = arith.constant 0 : index
    %51 = vector.load %arg14[%c0_37, %c0_38] : memref<256x64xf32, #tpu.memory_space<vmem>>, vector<256x64xf32>
    tpu.vector_store %arg14[%c0_37, %c0_38], %50 {strides = array<i32>} : memref<256x64xf32, #tpu.memory_space<vmem>>, vector<256x64xf32>,
    return
  }
  func.func @transform_0(%arg0: i32) -> (i32, i32) {
    %c0_i32 = arith.constant 0 : i32
    %c0_i32_0 = arith.constant 0 : i32
    return %arg0, %c0_i32 : i32, i32
  }
  func.func @transform_1(%arg0: i32) -> (i32, i32) {
    %c0_i32 = arith.constant 0 : i32
    %c0_i32_0 = arith.constant 0 : i32
    %c0_i32_1 = arith.constant 0 : i32
    return %c0_i32, %c0_i32_0 : i32, i32
  }
  func.func @transform_2(%arg0: i32) -> (i32, i32) {
    %c0_i32 = arith.constant 0 : i32
    %c0_i32_0 = arith.constant 0 : i32
    %c0_i32_1 = arith.constant 0 : i32
    return %c0_i32, %c0_i32_0 : i32, i32
  }
  func.func @transform_3(%arg0: i32) -> (i32, i32) {
    %c0_i32 = arith.constant 0 : i32
    %c0_i32_0 = arith.constant 0 : i32
    %c0_i32_1 = arith.constant 0 : i32
    return %c0_i32, %c0_i32_0 : i32, i32
  }
  func.func @transform_4(%arg0: i32) -> (i32, i32) {
    %c0_i32 = arith.constant 0 : i32
    %c0_i32_0 = arith.constant 0 : i32
    %c0_i32_1 = arith.constant 0 : i32
    return %c0_i32, %c0_i32_0 : i32, i32
  }
  func.func @transform_5(%arg0: i32) -> (i32, i32) {
    %c0_i32 = arith.constant 0 : i32
    %c0_i32_0 = arith.constant 0 : i32
    %c0_i32_1 = arith.constant 0 : i32
    return %c0_i32, %c0_i32_0 : i32, i32
  }
  func.func @transform_6(%arg0: i32) -> (i32, i32) {
    %c0_i32 = arith.constant 0 : i32
    %c0_i32_0 = arith.constant 0 : i32
    %c0_i32_1 = arith.constant 0 : i32
    return %c0_i32, %c0_i32_0 : i32, i32
  }
  func.func @transform_7(%arg0: i32) -> (i32, i32) {
    %c0_i32 = arith.constant 0 : i32
    %c0_i32_0 = arith.constant 0 : i32
    %c0_i32_1 = arith.constant 0 : i32
    return %c0_i32, %c0_i32_0 : i32, i32
  }
  func.func @transform_8(%arg0: i32) -> (i32, i32) {
    %c0_i32 = arith.constant 0 : i32
    %c0_i32_0 = arith.constant 0 : i32
    %c0_i32_1 = arith.constant 0 : i32
    return %c0_i32, %c0_i32_0 : i32, i32
  }
  func.func @transform_9(%arg0: i32) -> (i32, i32) {
    %c0_i32 = arith.constant 0 : i32
    %c0_i32_0 = arith.constant 0 : i32
    %c0_i32_1 = arith.constant 0 : i32
    return %c0_i32, %c0_i32_0 : i32, i32
  }
  func.func @transform_10(%arg0: i32) -> (i32, i32) {
    %c0_i32 = arith.constant 0 : i32
    %c0_i32_0 = arith.constant 0 : i32
    %c0_i32_1 = arith.constant 0 : i32
    return %c0_i32, %c0_i32_0 : i32, i32
  }
  func.func @transform_11(%arg0: i32) -> (i32, i32) {
    %c0_i32 = arith.constant 0 : i32
    %c0_i32_0 = arith.constant 0 : i32
    %c0_i32_1 = arith.constant 0 : i32
    return %c0_i32, %c0_i32_0 : i32, i32
  }
  func.func @transform_12(%arg0: i32) -> (i32, i32) {
    %c0_i32 = arith.constant 0 : i32
    %c0_i32_0 = arith.constant 0 : i32
    %c0_i32_1 = arith.constant 0 : i32
    return %c0_i32, %c0_i32_0 : i32, i32
  }
  func.func @transform_13(%arg0: i32) -> (i32, i32) {
    %c0_i32 = arith.constant 0 : i32
    %c0_i32_0 = arith.constant 0 : i32
    return %arg0, %c0_i32 : i32, i32
  }
}

</mosaic_0001>

<llo_original>
// kernel: tpu_custom_call.1
$region0: #{tpu_custom_call.1}
  #allocation0 [shape = 'u32[]', space=smem, size = 0x4, offset = 0x4, fixed_abs, tag = 'smem constant byte address 0x4 - core index']
  #allocation1 [shape = 'u32[72,128]{1,0:T(1,128)}', space=vmem, size = 0x9000, scoped, tag = 'internal scratch']
  %s0 = inlined_call_operand.vmem [shape: f32[512,32], index: 0, kind: input, shape index: {}]
  %s1 = inlined_call_operand.vmem [shape: f32[32,32], index: 1, kind: input, shape index: {}]
  %s2 = inlined_call_operand.vmem [shape: f32[1,32], index: 2, kind: input, shape index: {}]
  %s3 = inlined_call_operand.vmem [shape: f32[32,128], index: 3, kind: input, shape index: {}]
  %s4 = inlined_call_operand.vmem [shape: f32[1,128], index: 4, kind: input, shape index: {}]
  %s5 = inlined_call_operand.vmem [shape: f32[128,128], index: 5, kind: input, shape index: {}]
  %s6 = inlined_call_operand.vmem [shape: f32[1,128], index: 6, kind: input, shape index: {}]
  %s7 = inlined_call_operand.vmem [shape: f32[128,128], index: 7, kind: input, shape index: {}]
  %s8 = inlined_call_operand.vmem [shape: f32[1,128], index: 8, kind: input, shape index: {}]
  %s9 = inlined_call_operand.vmem [shape: f32[128,128], index: 9, kind: input, shape index: {}]
  %s10 = inlined_call_operand.vmem [shape: f32[1,128], index: 10, kind: input, shape index: {}]
  %s11 = inlined_call_operand.vmem [shape: f32[128,64], index: 11, kind: input, shape index: {}]
  %s12 = inlined_call_operand.vmem [shape: f32[1,64], index: 12, kind: input, shape index: {}]
  %s13 = inlined_call_operand.vmem [shape: f32[512,64], index: 13, kind: output, shape index: {}]
  %s14 = sld [smem:[#allocation0]]
  $region85: #{tpu_custom_call.1} parent=0
    _
  %s16 = ssub.s32 1, %s14
  %s17 = scalar_select 0, %s16, %s14
  loop: start=0, step=1, limit=4
  $region2: #{tpu_custom_call.1} parent=0 // loop_pre_header
    _
  $region3: #{tpu_custom_call.1} parent=0 // loop_header
    %s19 = sphi 0, %s23
    %p20 = scmp.ge.s32.totalorder %s19, 4
    %s29 = sphi 0, %s31
    %s32 = sphi 0, %s29
    %s33 = sphi 0, %s32
    %s49 = sphi 0, %s33
    %s53 = sphi 0, %s53
    %s55 = sphi 0, %s53
    %s56 = sphi 0, %s55
    %s70 = sphi 0, %s56
    %s74 = sphi 0, %s74
    %s76 = sphi 0, %s74
    %s77 = sphi 0, %s76
    %s91 = sphi 0, %s77
    %s95 = sphi 0, %s95
    %s97 = sphi 0, %s95
    %s98 = sphi 0, %s97
    %s112 = sphi 0, %s98
    %s116 = sphi 0, %s116
    %s118 = sphi 0, %s116
    %s119 = sphi 0, %s118
    %s133 = sphi 0, %s119
    %s137 = sphi 0, %s137
    %s139 = sphi 0, %s137
    %s140 = sphi 0, %s139
    %s154 = sphi 0, %s140
    %s158 = sphi 0, %s158
    %s160 = sphi 0, %s158
    %s161 = sphi 0, %s160
    %s175 = sphi 0, %s161
    %s179 = sphi 0, %s179
    %s181 = sphi 0, %s179
    %s182 = sphi 0, %s181
    %s196 = sphi 0, %s182
    %s200 = sphi 0, %s200
    %s202 = sphi 0, %s200
    %s203 = sphi 0, %s202
    %s217 = sphi 0, %s203
    %s221 = sphi 0, %s221
    %s223 = sphi 0, %s221
    %s224 = sphi 0, %s223
    %s238 = sphi 0, %s224
    %s242 = sphi 0, %s242
    %s244 = sphi 0, %s242
    %s245 = sphi 0, %s244
    %s259 = sphi 0, %s245
    %s263 = sphi 0, %s263
    %s265 = sphi 0, %s263
    %s266 = sphi 0, %s265
    %s280 = sphi 0, %s266
    %s284 = sphi 0, %s284
    %s286 = sphi 0, %s284
    %s287 = sphi 0, %s286
    %s301 = sphi 0, %s287
    %s307 = sphi 0, %s309
    %s310 = sphi 0, %s307
    %s311 = sphi 0, %s310
    %s327 = sphi 0, %s311
  $region4: #{tpu_custom_call.1} parent=0 // loop_header_branch
    %22 = sbr.rel (%p20) target = $region8
  $region5: #{tpu_custom_call.1} parent=0 // loop_body
    %s24 = ssub.s32 %s19, 1
    %s25 = ssub.s32 %s19, 2
    %s26 = sadd.s32 %s19, 1
    %s27 = ssub.s32 %s19, %s26
    %p28 = scmp.eq.s32.totalorder %s27, 0
    %s30 = sadd.s32 %s29, 1
    %s31 = scalar_select %p28, %s29, %s30
    %p34 = pneg %p28
    %p35 = scmp.eq.s32.totalorder %s19, 1
    %p36 = por %p34, %p35
    %p37 = scmp.ne.s32.totalorder %s29, %s32
    %p38 = scmp.eq.s32.totalorder %s19, 0
    %p39 = por %p37, %p38
    %p40 = scmp.ne.s32.totalorder %s29, %s32
    %p41 = scmp.eq.s32.totalorder %s24, 1
    %p42 = por %p40, %p41
    %p43 = scmp.ne.s32.totalorder %s32, %s33
    %p44 = scmp.eq.s32.totalorder %s24, 0
    %p45 = por %p43, %p44
    %p46 = scmp.ne.s32.totalorder %s32, %s33
    %p47 = scmp.eq.s32.totalorder %s25, 1
    %p48 = por %p46, %p47
    %p50 = scmp.ne.s32.totalorder %s33, %s49
    %p51 = scmp.eq.s32.totalorder %s25, 0
    %p52 = por %p50, %p51
    %s54 = sadd.s32 %s53, 1
    %p57 = scmp.eq.s32.totalorder %s19, 1
    %p58 = scmp.ne.s32.totalorder %s53, %s55
    %p59 = scmp.eq.s32.totalorder %s19, 0
    %p60 = por %p58, %p59
    %p61 = scmp.ne.s32.totalorder %s53, %s55
    %p62 = scmp.eq.s32.totalorder %s24, 1
    %p63 = por %p61, %p62
    %p64 = scmp.ne.s32.totalorder %s55, %s56
    %p65 = scmp.eq.s32.totalorder %s24, 0
    %p66 = por %p64, %p65
    %p67 = scmp.ne.s32.totalorder %s55, %s56
    %p68 = scmp.eq.s32.totalorder %s25, 1
    %p69 = por %p67, %p68
    %p71 = scmp.ne.s32.totalorder %s56, %s70
    %p72 = scmp.eq.s32.totalorder %s25, 0
    %p73 = por %p71, %p72
    %s75 = sadd.s32 %s74, 1
    %p78 = scmp.eq.s32.totalorder %s19, 1
    %p79 = scmp.ne.s32.totalorder %s74, %s76
    %p80 = scmp.eq.s32.totalorder %s19, 0
    %p81 = por %p79, %p80
    %p82 = scmp.ne.s32.totalorder %s74, %s76
    %p83 = scmp.eq.s32.totalorder %s24, 1
    %p84 = por %p82, %p83
    %p85 = scmp.ne.s32.totalorder %s76, %s77
    %p86 = scmp.eq.s32.totalorder %s24, 0
    %p87 = por %p85, %p86
    %p88 = scmp.ne.s32.totalorder %s76, %s77
    %p89 = scmp.eq.s32.totalorder %s25, 1
    %p90 = por %p88, %p89
    %p92 = scmp.ne.s32.totalorder %s77, %s91
    %p93 = scmp.eq.s32.totalorder %s25, 0
    %p94 = por %p92, %p93
    %s96 = sadd.s32 %s95, 1
    %p99 = scmp.eq.s32.totalorder %s19, 1
    %p100 = scmp.ne.s32.totalorder %s95, %s97
    %p101 = scmp.eq.s32.totalorder %s19, 0
    %p102 = por %p100, %p101
    %p103 = scmp.ne.s32.totalorder %s95, %s97
    %p104 = scmp.eq.s32.totalorder %s24, 1
    %p105 = por %p103, %p104
    %p106 = scmp.ne.s32.totalorder %s97, %s98
    %p107 = scmp.eq.s32.totalorder %s24, 0
    %p108 = por %p106, %p107
    %p109 = scmp.ne.s32.totalorder %s97, %s98
    %p110 = scmp.eq.s32.totalorder %s25, 1
    %p111 = por %p109, %p110
    %p113 = scmp.ne.s32.totalorder %s98, %s112
    %p114 = scmp.eq.s32.totalorder %s25, 0
    %p115 = por %p113, %p114
    %s117 = sadd.s32 %s116, 1
    %p120 = scmp.eq.s32.totalorder %s19, 1
    %p121 = scmp.ne.s32.totalorder %s116, %s118
    %p122 = scmp.eq.s32.totalorder %s19, 0
    %p123 = por %p121, %p122
    %p124 = scmp.ne.s32.totalorder %s116, %s118
    %p125 = scmp.eq.s32.totalorder %s24, 1
    %p126 = por %p124, %p125
    %p127 = scmp.ne.s32.totalorder %s118, %s119
    %p128 = scmp.eq.s32.totalorder %s24, 0
    %p129 = por %p127, %p128
    %p130 = scmp.ne.s32.totalorder %s118, %s119
    %p131 = scmp.eq.s32.totalorder %s25, 1
    %p132 = por %p130, %p131
    %p134 = scmp.ne.s32.totalorder %s119, %s133
    %p135 = scmp.eq.s32.totalorder %s25, 0
    %p136 = por %p134, %p135
    %s138 = sadd.s32 %s137, 1
    %p141 = scmp.eq.s32.totalorder %s19, 1
    %p142 = scmp.ne.s32.totalorder %s137, %s139
    %p143 = scmp.eq.s32.totalorder %s19, 0
    %p144 = por %p142, %p143
    %p145 = scmp.ne.s32.totalorder %s137, %s139
    %p146 = scmp.eq.s32.totalorder %s24, 1
    %p147 = por %p145, %p146
    %p148 = scmp.ne.s32.totalorder %s139, %s140
    %p149 = scmp.eq.s32.totalorder %s24, 0
    %p150 = por %p148, %p149
    %p151 = scmp.ne.s32.totalorder %s139, %s140
    %p152 = scmp.eq.s32.totalorder %s25, 1
    %p153 = por %p151, %p152
    %p155 = scmp.ne.s32.totalorder %s140, %s154
    %p156 = scmp.eq.s32.totalorder %s25, 0
    %p157 = por %p155, %p156
    %s159 = sadd.s32 %s158, 1
    %p162 = scmp.eq.s32.totalorder %s19, 1
    %p163 = scmp.ne.s32.totalorder %s158, %s160
    %p164 = scmp.eq.s32.totalorder %s19, 0
    %p165 = por %p163, %p164
    %p166 = scmp.ne.s32.totalorder %s158, %s160
    %p167 = scmp.eq.s32.totalorder %s24, 1
    %p168 = por %p166, %p167
    %p169 = scmp.ne.s32.totalorder %s160, %s161
    %p170 = scmp.eq.s32.totalorder %s24, 0
    %p171 = por %p169, %p170
    %p172 = scmp.ne.s32.totalorder %s160, %s161
    %p173 = scmp.eq.s32.totalorder %s25, 1
    %p174 = por %p172, %p173
    %p176 = scmp.ne.s32.totalorder %s161, %s175
    %p177 = scmp.eq.s32.totalorder %s25, 0
    %p178 = por %p176, %p177
    %s180 = sadd.s32 %s179, 1
    %p183 = scmp.eq.s32.totalorder %s19, 1
    %p184 = scmp.ne.s32.totalorder %s179, %s181
    %p185 = scmp.eq.s32.totalorder %s19, 0
    %p186 = por %p184, %p185
    %p187 = scmp.ne.s32.totalorder %s179, %s181
    %p188 = scmp.eq.s32.totalorder %s24, 1
    %p189 = por %p187, %p188
    %p190 = scmp.ne.s32.totalorder %s181, %s182
    %p191 = scmp.eq.s32.totalorder %s24, 0
    %p192 = por %p190, %p191
    %p193 = scmp.ne.s32.totalorder %s181, %s182
    %p194 = scmp.eq.s32.totalorder %s25, 1
    %p195 = por %p193, %p194
    %p197 = scmp.ne.s32.totalorder %s182, %s196
    %p198 = scmp.eq.s32.totalorder %s25, 0
    %p199 = por %p197, %p198
    %s201 = sadd.s32 %s200, 1
    %p204 = scmp.eq.s32.totalorder %s19, 1
    %p205 = scmp.ne.s32.totalorder %s200, %s202
    %p206 = scmp.eq.s32.totalorder %s19, 0
    %p207 = por %p205, %p206
    %p208 = scmp.ne.s32.totalorder %s200, %s202
    %p209 = scmp.eq.s32.totalorder %s24, 1
    %p210 = por %p208, %p209
    %p211 = scmp.ne.s32.totalorder %s202, %s203
    %p212 = scmp.eq.s32.totalorder %s24, 0
    %p213 = por %p211, %p212
    %p214 = scmp.ne.s32.totalorder %s202, %s203
    %p215 = scmp.eq.s32.totalorder %s25, 1
    %p216 = por %p214, %p215
    %p218 = scmp.ne.s32.totalorder %s203, %s217
    %p219 = scmp.eq.s32.totalorder %s25, 0
    %p220 = por %p218, %p219
    %s222 = sadd.s32 %s221, 1
    %p225 = scmp.eq.s32.totalorder %s19, 1
    %p226 = scmp.ne.s32.totalorder %s221, %s223
    %p227 = scmp.eq.s32.totalorder %s19, 0
    %p228 = por %p226, %p227
    %p229 = scmp.ne.s32.totalorder %s221, %s223
    %p230 = scmp.eq.s32.totalorder %s24, 1
    %p231 = por %p229, %p230
    %p232 = scmp.ne.s32.totalorder %s223, %s224
    %p233 = scmp.eq.s32.totalorder %s24, 0
    %p234 = por %p232, %p233
    %p235 = scmp.ne.s32.totalorder %s223, %s224
    %p236 = scmp.eq.s32.totalorder %s25, 1
    %p237 = por %p235, %p236
    %p239 = scmp.ne.s32.totalorder %s224, %s238
    %p240 = scmp.eq.s32.totalorder %s25, 0
    %p241 = por %p239, %p240
    %s243 = sadd.s32 %s242, 1
    %p246 = scmp.eq.s32.totalorder %s19, 1
    %p247 = scmp.ne.s32.totalorder %s242, %s244
    %p248 = scmp.eq.s32.totalorder %s19, 0
    %p249 = por %p247, %p248
    %p250 = scmp.ne.s32.totalorder %s242, %s244
    %p251 = scmp.eq.s32.totalorder %s24, 1
    %p252 = por %p250, %p251
    %p253 = scmp.ne.s32.totalorder %s244, %s245
    %p254 = scmp.eq.s32.totalorder %s24, 0
    %p255 = por %p253, %p254
    %p256 = scmp.ne.s32.totalorder %s244, %s245
    %p257 = scmp.eq.s32.totalorder %s25, 1
    %p258 = por %p256, %p257
    %p260 = scmp.ne.s32.totalorder %s245, %s259
    %p261 = scmp.eq.s32.totalorder %s25, 0
    %p262 = por %p260, %p261
    %s264 = sadd.s32 %s263, 1
    %p267 = scmp.eq.s32.totalorder %s19, 1
    %p268 = scmp.ne.s32.totalorder %s263, %s265
    %p269 = scmp.eq.s32.totalorder %s19, 0
    %p270 = por %p268, %p269
    %p271 = scmp.ne.s32.totalorder %s263, %s265
    %p272 = scmp.eq.s32.totalorder %s24, 1
    %p273 = por %p271, %p272
    %p274 = scmp.ne.s32.totalorder %s265, %s266
    %p275 = scmp.eq.s32.totalorder %s24, 0
    %p276 = por %p274, %p275
    %p277 = scmp.ne.s32.totalorder %s265, %s266
    %p278 = scmp.eq.s32.totalorder %s25, 1
    %p279 = por %p277, %p278
    %p281 = scmp.ne.s32.totalorder %s266, %s280
    %p282 = scmp.eq.s32.totalorder %s25, 0
    %p283 = por %p281, %p282
    %s285 = sadd.s32 %s284, 1
    %p288 = scmp.eq.s32.totalorder %s19, 1
    %p289 = scmp.ne.s32.totalorder %s284, %s286
    %p290 = scmp.eq.s32.totalorder %s19, 0
    %p291 = por %p289, %p290
    %p292 = scmp.ne.s32.totalorder %s284, %s286
    %p293 = scmp.eq.s32.totalorder %s24, 1
    %p294 = por %p292, %p293
    %p295 = scmp.ne.s32.totalorder %s286, %s287
    %p296 = scmp.eq.s32.totalorder %s24, 0
    %p297 = por %p295, %p296
    %p298 = scmp.ne.s32.totalorder %s286, %s287
    %p299 = scmp.eq.s32.totalorder %s25, 1
    %p300 = por %p298, %p299
    %p302 = scmp.ne.s32.totalorder %s287, %s301
    %p303 = scmp.eq.s32.totalorder %s25, 0
    %p304 = por %p302, %p303
    %s305 = ssub.s32 %s19, %s26
    %p306 = scmp.eq.s32.totalorder %s305, 0
    %s308 = sadd.s32 %s307, 1
    %s309 = scalar_select %p306, %s307, %s308
    %p312 = pneg %p306
    %p313 = scmp.eq.s32.totalorder %s19, 1
    %p314 = por %p312, %p313
    %p315 = scmp.ne.s32.totalorder %s307, %s310
    %p316 = scmp.eq.s32.totalorder %s19, 0
    %p317 = por %p315, %p316
    %p318 = scmp.ne.s32.totalorder %s307, %s310
    %p319 = scmp.eq.s32.totalorder %s24, 1
    %p320 = por %p318, %p319
    %p321 = scmp.ne.s32.totalorder %s310, %s311
    %p322 = scmp.eq.s32.totalorder %s24, 0
    %p323 = por %p321, %p322
    %p324 = scmp.ne.s32.totalorder %s310, %s311
    %p325 = scmp.eq.s32.totalorder %s25, 1
    %p326 = por %p324, %p325
    %p328 = scmp.ne.s32.totalorder %s311, %s327
    %p329 = scmp.eq.s32.totalorder %s25, 0
    %p330 = por %p328, %p329
    %p331 = scmp.le.s32.totalorder 1, %s19
    %p332 = scmp.lt.s32.totalorder %s19, 3
    %p333 = pnand %p331, %p332
    %p334 = pneg %p333
    // Predicated region
    $region9: #{tpu_custom_call.1} parent=5 // pred_check
      _
    $region10: #{tpu_custom_call.1} parent=5 // pred_check_branch
      %336 = sbr.rel (%p333) target = $region12
    $region11: #{tpu_custom_call.1} parent=5 // pred_region
      %s337 = ssub.s32 %s19, 1
      // Predicated region
      $region13: #{tpu_custom_call.1} parent=11 // pred_check
        %p338 = pneg %p66
      $region14: #{tpu_custom_call.1} parent=11 // pred_check_branch
        %340 = sbr.rel (%p338) target = $region16
      $region15: #{tpu_custom_call.1} parent=11 // pred_region
        _
      $region16: #{tpu_custom_call.1} parent=11 // pred_fallthru
        _
      // Predicated region
      $region17: #{tpu_custom_call.1} parent=11 // pred_check
        %p341 = pneg %p87
      $region18: #{tpu_custom_call.1} parent=11 // pred_check_branch
        %343 = sbr.rel (%p341) target = $region20
      $region19: #{tpu_custom_call.1} parent=11 // pred_region
        _
      $region20: #{tpu_custom_call.1} parent=11 // pred_fallthru
        _
      // Predicated region
      $region21: #{tpu_custom_call.1} parent=11 // pred_check
        %p344 = pneg %p108
      $region22: #{tpu_custom_call.1} parent=11 // pred_check_branch
        %346 = sbr.rel (%p344) target = $region24
      $region23: #{tpu_custom_call.1} parent=11 // pred_region
        _
      $region24: #{tpu_custom_call.1} parent=11 // pred_fallthru
        _
      // Predicated region
      $region25: #{tpu_custom_call.1} parent=11 // pred_check
        %p347 = pneg %p129
      $region26: #{tpu_custom_call.1} parent=11 // pred_check_branch
        %349 = sbr.rel (%p347) target = $region28
      $region27: #{tpu_custom_call.1} parent=11 // pred_region
        _
      $region28: #{tpu_custom_call.1} parent=11 // pred_fallthru
        _
      // Predicated region
      $region29: #{tpu_custom_call.1} parent=11 // pred_check
        %p350 = pneg %p150
      $region30: #{tpu_custom_call.1} parent=11 // pred_check_branch
        %352 = sbr.rel (%p350) target = $region32
      $region31: #{tpu_custom_call.1} parent=11 // pred_region
        _
      $region32: #{tpu_custom_call.1} parent=11 // pred_fallthru
        _
      // Predicated region
      $region33: #{tpu_custom_call.1} parent=11 // pred_check
        %p353 = pneg %p171
      $region34: #{tpu_custom_call.1} parent=11 // pred_check_branch
        %355 = sbr.rel (%p353) target = $region36
      $region35: #{tpu_custom_call.1} parent=11 // pred_region
        _
      $region36: #{tpu_custom_call.1} parent=11 // pred_fallthru
        _
      // Predicated region
      $region37: #{tpu_custom_call.1} parent=11 // pred_check
        %p356 = pneg %p192
      $region38: #{tpu_custom_call.1} parent=11 // pred_check_branch
        %358 = sbr.rel (%p356) target = $region40
      $region39: #{tpu_custom_call.1} parent=11 // pred_region
        _
      $region40: #{tpu_custom_call.1} parent=11 // pred_fallthru
        _
      // Predicated region
      $region41: #{tpu_custom_call.1} parent=11 // pred_check
        %p359 = pneg %p213
      $region42: #{tpu_custom_call.1} parent=11 // pred_check_branch
        %361 = sbr.rel (%p359) target = $region44
      $region43: #{tpu_custom_call.1} parent=11 // pred_region
        _
      $region44: #{tpu_custom_call.1} parent=11 // pred_fallthru
        _
      // Predicated region
      $region45: #{tpu_custom_call.1} parent=11 // pred_check
        %p362 = pneg %p234
      $region46: #{tpu_custom_call.1} parent=11 // pred_check_branch
        %364 = sbr.rel (%p362) target = $region48
      $region47: #{tpu_custom_call.1} parent=11 // pred_region
        _
      $region48: #{tpu_custom_call.1} parent=11 // pred_fallthru
        _
      // Predicated region
      $region49: #{tpu_custom_call.1} parent=11 // pred_check
        %p365 = pneg %p255
      $region50: #{tpu_custom_call.1} parent=11 // pred_check_branch
        %367 = sbr.rel (%p365) target = $region52
      $region51: #{tpu_custom_call.1} parent=11 // pred_region
        _
      $region52: #{tpu_custom_call.1} parent=11 // pred_fallthru
        _
      // Predicated region
      $region53: #{tpu_custom_call.1} parent=11 // pred_check
        %p368 = pneg %p276
      $region54: #{tpu_custom_call.1} parent=11 // pred_check_branch
        %370 = sbr.rel (%p368) target = $region56
      $region55: #{tpu_custom_call.1} parent=11 // pred_region
        _
      $region56: #{tpu_custom_call.1} parent=11 // pred_fallthru
        _
      // Predicated region
      $region57: #{tpu_custom_call.1} parent=11 // pred_check
        %p371 = pneg %p297
      $region58: #{tpu_custom_call.1} parent=11 // pred_check_branch
        %373 = sbr.rel (%p371) target = $region60
      $region59: #{tpu_custom_call.1} parent=11 // pred_region
        _
      $region60: #{tpu_custom_call.1} parent=11 // pred_fallthru
        _
    $region12: #{tpu_custom_call.1} parent=5 // pred_fallthru
      _
    %p374 = scmp.lt.s32.totalorder %s19, 2
    // Predicated region
    $region61: #{tpu_custom_call.1} parent=5 // pred_check
      %p375 = pneg %p374
    $region62: #{tpu_custom_call.1} parent=5 // pred_check_branch
      %377 = sbr.rel (%p375) target = $region64
    $region63: #{tpu_custom_call.1} parent=5 // pred_region
      // Predicated region
      $region65: #{tpu_custom_call.1} parent=63 // pred_check
        %p378 = pneg %p39
      $region66: #{tpu_custom_call.1} parent=63 // pred_check_branch
        %380 = sbr.rel (%p378) target = $region68
      $region67: #{tpu_custom_call.1} parent=63 // pred_region
        %s381 = smul.u32 32, %s19
        %p382 = scmp.lt.s32.totalorder %s381, 63
        %s383 = scalar_select %p382, %s381, 63
        %s384 = smul.addr %s383, 8
        %s385 = scalar_lea.vmem %s0, %s384
        %s386 = smul.u32 32, %s19
      $region68: #{tpu_custom_call.1} parent=63 // pred_fallthru
        _
    $region64: #{tpu_custom_call.1} parent=5 // pred_fallthru
      _
    %p387 = scmp.le.s32.totalorder 1, %s19
    %p388 = scmp.lt.s32.totalorder %s19, 3
    %p389 = pnand %p387, %p388
    %p390 = pneg %p389
    // Predicated region
    $region69: #{tpu_custom_call.1} parent=5 // pred_check
      _
    $region70: #{tpu_custom_call.1} parent=5 // pred_check_branch
      %392 = sbr.rel (%p389) target = $region72
    $region71: #{tpu_custom_call.1} parent=5 // pred_region
      %s393 = ssub.s32 %s19, 1
      %s394 = smul.u32 32, %s24
      %p395 = scmp.lt.s32.totalorder %s394, 63
      %s396 = scalar_select %p395, %s394, 63
      %s397 = smul.addr %s396, 8
      %s398 = scalar_lea.vmem %s0, %s397
      %p399 = pneg %p45
      %p400 = pneg %p42
      %p401 = pneg %p66
      %p402 = pneg %p63
      %p403 = pneg %p87
      %p404 = pneg %p84
      %p405 = pneg %p108
      %p406 = pneg %p105
      %p407 = pneg %p129
      %p408 = pneg %p126
      %p409 = pneg %p150
      %p410 = pneg %p147
      %p411 = pneg %p171
      %p412 = pneg %p168
      %p413 = pneg %p192
      %p414 = pneg %p189
      %p415 = pneg %p213
      %p416 = pneg %p210
      %p417 = pneg %p234
      %p418 = pneg %p231
      %p419 = pneg %p255
      %p420 = pneg %p252
      %p421 = pneg %p276
      %p422 = pneg %p273
      %p423 = pneg %p297
      %p424 = pneg %p294
      %p425 = pneg %p323
      %p426 = pneg %p320
      %s427 = smul.u32 32, %s24
      %p428 = scmp.lt.s32.totalorder %s427, 63
      %s429 = scalar_select %p428, %s427, 63
      %s430 = smul.addr %s429, 8
      %s431 = scalar_lea.vmem %s13, %s430
      %s432 = smul.u32 32, %s24
      %p433 = scmp.lt.s32.totalorder %s432, 63
      %s434 = scalar_select %p433, %s432, 63
      %s435 = smul.addr %s434, 8
      %s436 = scalar_lea.vmem %s0, %s435
      %s437 = smul.u32 32, %s24
      %s438 = smul.u32 32, %s24
      %p439 = scmp.lt.s32.totalorder %s438, 63
      %s440 = scalar_select %p439, %s438, 63
      %s441 = smul.addr %s440, 8
      %s442 = scalar_lea.vmem %s13, %s441
      %s443 = smul.u32 32, %s24
      %v444 = vld [vmem:[%s436] sm:$0xff]
      %v445 = vld [vmem:[%s436 + $0x8] sm:$0xff]
      %v446 = vld [vmem:[%s436 + $0x10] sm:$0xff]
      %v447 = vld [vmem:[%s436 + $0x18] sm:$0xff]
      %v448 = vld [vmem:[%s436 + $0x20] sm:$0xff]
      %v449 = vld [vmem:[%s436 + $0x28] sm:$0xff]
      %v450 = vld [vmem:[%s436 + $0x30] sm:$0xff]
      %v451 = vld [vmem:[%s436 + $0x38] sm:$0xff]
      %v452 = vld [vmem:[%s436 + $0x40] sm:$0xff]
      %v453 = vld [vmem:[%s436 + $0x48] sm:$0xff]
      %v454 = vld [vmem:[%s436 + $0x50] sm:$0xff]
      %v455 = vld [vmem:[%s436 + $0x58] sm:$0xff]
      %v456 = vld [vmem:[%s436 + $0x60] sm:$0xff]
      %v457 = vld [vmem:[%s436 + $0x68] sm:$0xff]
      %v458 = vld [vmem:[%s436 + $0x70] sm:$0xff]
      %v459 = vld [vmem:[%s436 + $0x78] sm:$0xff]
      %v460 = vld [vmem:[%s436 + $0x80] sm:$0xff]
      %v461 = vld [vmem:[%s436 + $0x88] sm:$0xff]
      %v462 = vld [vmem:[%s436 + $0x90] sm:$0xff]
      %v463 = vld [vmem:[%s436 + $0x98] sm:$0xff]
      %v464 = vld [vmem:[%s436 + $0xa0] sm:$0xff]
      %v465 = vld [vmem:[%s436 + $0xa8] sm:$0xff]
      %v466 = vld [vmem:[%s436 + $0xb0] sm:$0xff]
      %v467 = vld [vmem:[%s436 + $0xb8] sm:$0xff]
      %v468 = vld [vmem:[%s436 + $0xc0] sm:$0xff]
      %v469 = vld [vmem:[%s436 + $0xc8] sm:$0xff]
      %v470 = vld [vmem:[%s436 + $0xd0] sm:$0xff]
      %v471 = vld [vmem:[%s436 + $0xd8] sm:$0xff]
      %v472 = vld [vmem:[%s436 + $0xe0] sm:$0xff]
      %v473 = vld [vmem:[%s436 + $0xe8] sm:$0xff]
      %v474 = vld [vmem:[%s436 + $0xf0] sm:$0xff]
      %v475 = vld [vmem:[%s436 + $0xf8] sm:$0xff]
      %v476 = vld [vmem:[%s1] sm:$0xff]
      %v477 = vld [vmem:[%s1 + $0x8] sm:$0xff]
      %v478 = vld [vmem:[%s1 + $0x10] sm:$0xff]
      %v479 = vld [vmem:[%s1 + $0x18] sm:$0xff]
      %v480 = vld [vmem:[%s2] sm:$0x1]
      %v482 = vperm.slane %v480, 0
      %vm484 = vcmask 261120
      %v486 = vsel %vm484, %v444, 0
      %v489 = vsel %vm484, %v445, 0
      %v492 = vsel %vm484, %v446, 0
      %v495 = vsel %vm484, %v447, 0
      %v498 = vsel %vm484, %v448, 0
      %v501 = vsel %vm484, %v449, 0
      %v504 = vsel %vm484, %v450, 0
      %v507 = vsel %vm484, %v451, 0
      %v510 = vsel %vm484, %v452, 0
      %v513 = vsel %vm484, %v453, 0
      %v516 = vsel %vm484, %v454, 0
      %v519 = vsel %vm484, %v455, 0
      %v522 = vsel %vm484, %v456, 0
      %v525 = vsel %vm484, %v457, 0
      %v528 = vsel %vm484, %v458, 0
      %v531 = vsel %vm484, %v459, 0
      %v534 = vsel %vm484, %v460, 0
      %v537 = vsel %vm484, %v461, 0
      %v540 = vsel %vm484, %v462, 0
      %v543 = vsel %vm484, %v463, 0
      %v546 = vsel %vm484, %v464, 0
      %v549 = vsel %vm484, %v465, 0
      %v552 = vsel %vm484, %v466, 0
      %v555 = vsel %vm484, %v467, 0
      %v558 = vsel %vm484, %v468, 0
      %v561 = vsel %vm484, %v469, 0
      %v564 = vsel %vm484, %v470, 0
      %v567 = vsel %vm484, %v471, 0
      %v570 = vsel %vm484, %v472, 0
      %v573 = vsel %vm484, %v473, 0
      %v576 = vsel %vm484, %v474, 0
      %v579 = vsel %vm484, %v475, 0
      %581 = vmatpush.msra.mxu0 0.0
      %582 = vmatpush.msra.mxu0 0.0
      %583 = vmatpush.msra.mxu0 0.0
      %584 = vmatpush.msra.mxu0 0.0
      %585 = vmatpush.msra.mxu0 0.0
      %586 = vmatpush.msra.mxu0 0.0
      %587 = vmatpush.msra.mxu0 0.0
      %588 = vmatpush.msra.mxu0 0.0
      %589 = vmatpush.msra.mxu0 0.0
      %590 = vmatpush.msra.mxu0 0.0
      %591 = vmatpush.msra.mxu0 0.0
      %592 = vmatpush.msra.mxu0 0.0
      %593 = vmatpush.msra.mxu0 %v479
      %594 = vmatpush.msra.mxu0 %v478
      %595 = vmatpush.msra.mxu0 %v477
      %596 = vmatpush.msra.mxu0 %v476
      %597 = vmatmul.f32.gmra.mxu0 %v486
      %v598 = vpop.f32.mrf.mxu0
      %v599 = vadd.f32 %v482, %v598
      %600 = vmatmul.f32.gmra.mxu0 %v489
      %v601 = vpop.f32.mrf.mxu0
      %v602 = vadd.f32 %v482, %v601
      %603 = vmatmul.f32.gmra.mxu0 %v492
      %v604 = vpop.f32.mrf.mxu0
      %v605 = vadd.f32 %v482, %v604
      %606 = vmatmul.f32.gmra.mxu0 %v495
      %v607 = vpop.f32.mrf.mxu0
      %v608 = vadd.f32 %v482, %v607
      %609 = vmatmul.f32.gmra.mxu0 %v498
      %v610 = vpop.f32.mrf.mxu0
      %v611 = vadd.f32 %v482, %v610
      %612 = vmatmul.f32.gmra.mxu0 %v501
      %v613 = vpop.f32.mrf.mxu0
      %v614 = vadd.f32 %v482, %v613
      %615 = vmatmul.f32.gmra.mxu0 %v504
      %v616 = vpop.f32.mrf.mxu0
      %v617 = vadd.f32 %v482, %v616
      %618 = vmatmul.f32.gmra.mxu0 %v507
      %v619 = vpop.f32.mrf.mxu0
      %v620 = vadd.f32 %v482, %v619
      %621 = vmatmul.f32.gmra.mxu0 %v510
      %v622 = vpop.f32.mrf.mxu0
      %v623 = vadd.f32 %v482, %v622
      %624 = vmatmul.f32.gmra.mxu0 %v513
      %v625 = vpop.f32.mrf.mxu0
      %v626 = vadd.f32 %v482, %v625
      %627 = vmatmul.f32.gmra.mxu0 %v516
      %v628 = vpop.f32.mrf.mxu0
      %v629 = vadd.f32 %v482, %v628
      %630 = vmatmul.f32.gmra.mxu0 %v519
      %v631 = vpop.f32.mrf.mxu0
      %v632 = vadd.f32 %v482, %v631
      %633 = vmatmul.f32.gmra.mxu0 %v522
      %v634 = vpop.f32.mrf.mxu0
      %v635 = vadd.f32 %v482, %v634
      %636 = vmatmul.f32.gmra.mxu0 %v525
      %v637 = vpop.f32.mrf.mxu0
      %v638 = vadd.f32 %v482, %v637
      %639 = vmatmul.f32.gmra.mxu0 %v528
      %v640 = vpop.f32.mrf.mxu0
      %v641 = vadd.f32 %v482, %v640
      %642 = vmatmul.f32.gmra.mxu0 %v531
      %v643 = vpop.f32.mrf.mxu0
      %v644 = vadd.f32 %v482, %v643
      %645 = vmatmul.f32.gmra.mxu0 %v534
      %v646 = vpop.f32.mrf.mxu0
      %v647 = vadd.f32 %v482, %v646
      %648 = vmatmul.f32.gmra.mxu0 %v537
      %v649 = vpop.f32.mrf.mxu0
      %v650 = vadd.f32 %v482, %v649
      %651 = vmatmul.f32.gmra.mxu0 %v540
      %v652 = vpop.f32.mrf.mxu0
      %v653 = vadd.f32 %v482, %v652
      %654 = vmatmul.f32.gmra.mxu0 %v543
      %v655 = vpop.f32.mrf.mxu0
      %v656 = vadd.f32 %v482, %v655
      %657 = vmatmul.f32.gmra.mxu0 %v546
      %v658 = vpop.f32.mrf.mxu0
      %v659 = vadd.f32 %v482, %v658
      %660 = vmatmul.f32.gmra.mxu0 %v549
      %v661 = vpop.f32.mrf.mxu0
      %v662 = vadd.f32 %v482, %v661
      %663 = vmatmul.f32.gmra.mxu0 %v552
      %v664 = vpop.f32.mrf.mxu0
      %v665 = vadd.f32 %v482, %v664
      %666 = vmatmul.f32.gmra.mxu0 %v555
      %v667 = vpop.f32.mrf.mxu0
      %v668 = vadd.f32 %v482, %v667
      %669 = vmatmul.f32.gmra.mxu0 %v558
      %v670 = vpop.f32.mrf.mxu0
      %v671 = vadd.f32 %v482, %v670
      %672 = vmatmul.f32.gmra.mxu0 %v561
      %v673 = vpop.f32.mrf.mxu0
      %v674 = vadd.f32 %v482, %v673
      %675 = vmatmul.f32.gmra.mxu0 %v564
      %v676 = vpop.f32.mrf.mxu0
      %v677 = vadd.f32 %v482, %v676
      %678 = vmatmul.f32.gmra.mxu0 %v567
      %v679 = vpop.f32.mrf.mxu0
      %v680 = vadd.f32 %v482, %v679
      %681 = vmatmul.f32.gmra.mxu0 %v570
      %v682 = vpop.f32.mrf.mxu0
      %v683 = vadd.f32 %v482, %v682
      %684 = vmatmul.f32.gmra.mxu0 %v573
      %v685 = vpop.f32.mrf.mxu0
      %v686 = vadd.f32 %v482, %v685
      %687 = vmatmul.f32.gmra.mxu0 %v576
      %v688 = vpop.f32.mrf.mxu0
      %v689 = vadd.f32 %v482, %v688
      %690 = vmatmul.f32.gmra.mxu0 %v579
      %v691 = vpop.f32.mrf.mxu0
      %v692 = vadd.f32 %v482, %v691
      %693 = vdwg.mxu0
      %vm694 = vcmp.ge.f32.partialorder %v599, 0.0
      %vm695 = vcmp.ge.f32.partialorder %v602, 0.0
      %vm696 = vcmp.ge.f32.partialorder %v605, 0.0
      %vm697 = vcmp.ge.f32.partialorder %v608, 0.0
      %vm698 = vcmp.ge.f32.partialorder %v611, 0.0
      %vm699 = vcmp.ge.f32.partialorder %v614, 0.0
      %vm700 = vcmp.ge.f32.partialorder %v617, 0.0
      %vm701 = vcmp.ge.f32.partialorder %v620, 0.0
      %vm702 = vcmp.ge.f32.partialorder %v623, 0.0
      %vm703 = vcmp.ge.f32.partialorder %v626, 0.0
      %vm704 = vcmp.ge.f32.partialorder %v629, 0.0
      %vm705 = vcmp.ge.f32.partialorder %v632, 0.0
      %vm706 = vcmp.ge.f32.partialorder %v635, 0.0
      %vm707 = vcmp.ge.f32.partialorder %v638, 0.0
      %vm708 = vcmp.ge.f32.partialorder %v641, 0.0
      %vm709 = vcmp.ge.f32.partialorder %v644, 0.0
      %vm710 = vcmp.ge.f32.partialorder %v647, 0.0
      %vm711 = vcmp.ge.f32.partialorder %v650, 0.0
      %vm712 = vcmp.ge.f32.partialorder %v653, 0.0
      %vm713 = vcmp.ge.f32.partialorder %v656, 0.0
      %vm714 = vcmp.ge.f32.partialorder %v659, 0.0
      %vm715 = vcmp.ge.f32.partialorder %v662, 0.0
      %vm716 = vcmp.ge.f32.partialorder %v665, 0.0
      %vm717 = vcmp.ge.f32.partialorder %v668, 0.0
      %vm718 = vcmp.ge.f32.partialorder %v671, 0.0
      %vm719 = vcmp.ge.f32.partialorder %v674, 0.0
      %vm720 = vcmp.ge.f32.partialorder %v677, 0.0
      %vm721 = vcmp.ge.f32.partialorder %v680, 0.0
      %vm722 = vcmp.ge.f32.partialorder %v683, 0.0
      %vm723 = vcmp.ge.f32.partialorder %v686, 0.0
      %vm724 = vcmp.ge.f32.partialorder %v689, 0.0
      %vm725 = vcmp.ge.f32.partialorder %v692, 0.0
      %v726 = vmul.f32 %v599, 0.01
      %v727 = vmul.f32 %v602, 0.01
      %v728 = vmul.f32 %v605, 0.01
      %v729 = vmul.f32 %v608, 0.01
      %v730 = vmul.f32 %v611, 0.01
      %v731 = vmul.f32 %v614, 0.01
      %v732 = vmul.f32 %v617, 0.01
      %v733 = vmul.f32 %v620, 0.01
      %v734 = vmul.f32 %v623, 0.01
      %v735 = vmul.f32 %v626, 0.01
      %v736 = vmul.f32 %v629, 0.01
      %v737 = vmul.f32 %v632, 0.01
      %v738 = vmul.f32 %v635, 0.01
      %v739 = vmul.f32 %v638, 0.01
      %v740 = vmul.f32 %v641, 0.01
      %v741 = vmul.f32 %v644, 0.01
      %v742 = vmul.f32 %v647, 0.01
      %v743 = vmul.f32 %v650, 0.01
      %v744 = vmul.f32 %v653, 0.01
      %v745 = vmul.f32 %v656, 0.01
      %v746 = vmul.f32 %v659, 0.01
      %v747 = vmul.f32 %v662, 0.01
      %v748 = vmul.f32 %v665, 0.01
      %v749 = vmul.f32 %v668, 0.01
      %v750 = vmul.f32 %v671, 0.01
      %v751 = vmul.f32 %v674, 0.01
      %v752 = vmul.f32 %v677, 0.01
      %v753 = vmul.f32 %v680, 0.01
      %v754 = vmul.f32 %v683, 0.01
      %v755 = vmul.f32 %v686, 0.01
      %v756 = vmul.f32 %v689, 0.01
      %v757 = vmul.f32 %v692, 0.01
      %v758 = vsel %vm694, %v599, %v726
      %v759 = vsel %vm695, %v602, %v727
      %v760 = vsel %vm696, %v605, %v728
      %v761 = vsel %vm697, %v608, %v729
      %v762 = vsel %vm698, %v611, %v730
      %v763 = vsel %vm699, %v614, %v731
      %v764 = vsel %vm700, %v617, %v732
      %v765 = vsel %vm701, %v620, %v733
      %v766 = vsel %vm702, %v623, %v734
      %v767 = vsel %vm703, %v626, %v735
      %v768 = vsel %vm704, %v629, %v736
      %v769 = vsel %vm705, %v632, %v737
      %v770 = vsel %vm706, %v635, %v738
      %v771 = vsel %vm707, %v638, %v739
      %v772 = vsel %vm708, %v641, %v740
      %v773 = vsel %vm709, %v644, %v741
      %v774 = vsel %vm710, %v647, %v742
      %v775 = vsel %vm711, %v650, %v743
      %v776 = vsel %vm712, %v653, %v744
      %v777 = vsel %vm713, %v656, %v745
      %v778 = vsel %vm714, %v659, %v746
      %v779 = vsel %vm715, %v662, %v747
      %v780 = vsel %vm716, %v665, %v748
      %v781 = vsel %vm717, %v668, %v749
      %v782 = vsel %vm718, %v671, %v750
      %v783 = vsel %vm719, %v674, %v751
      %v784 = vsel %vm720, %v677, %v752
      %v785 = vsel %vm721, %v680, %v753
      %v786 = vsel %vm722, %v683, %v754
      %v787 = vsel %vm723, %v686, %v755
      %v788 = vsel %vm724, %v689, %v756
      %v789 = vsel %vm725, %v692, %v757
      %v790 = vld [vmem:[%s3] sm:$0xff]
      %v791 = vld [vmem:[%s3 + $0x8] sm:$0xff]
      %v792 = vld [vmem:[%s3 + $0x10] sm:$0xff]
      %v793 = vld [vmem:[%s3 + $0x18] sm:$0xff]
      %v794 = vld [vmem:[%s4] sm:$0x1]
      %v796 = vperm.slane %v794, 0
      %v799 = vsel %vm484, %v758, 0
      %v802 = vsel %vm484, %v759, 0
      %v805 = vsel %vm484, %v760, 0
      %v808 = vsel %vm484, %v761, 0
      %v811 = vsel %vm484, %v762, 0
      %v814 = vsel %vm484, %v763, 0
      %v817 = vsel %vm484, %v764, 0
      %v820 = vsel %vm484, %v765, 0
      %v823 = vsel %vm484, %v766, 0
      %v826 = vsel %vm484, %v767, 0
      %v829 = vsel %vm484, %v768, 0
      %v832 = vsel %vm484, %v769, 0
      %v835 = vsel %vm484, %v770, 0
      %v838 = vsel %vm484, %v771, 0
      %v841 = vsel %vm484, %v772, 0
      %v844 = vsel %vm484, %v773, 0
      %v847 = vsel %vm484, %v774, 0
      %v850 = vsel %vm484, %v775, 0
      %v853 = vsel %vm484, %v776, 0
      %v856 = vsel %vm484, %v777, 0
      %v859 = vsel %vm484, %v778, 0
      %v862 = vsel %vm484, %v779, 0
      %v865 = vsel %vm484, %v780, 0
      %v868 = vsel %vm484, %v781, 0
      %v871 = vsel %vm484, %v782, 0
      %v874 = vsel %vm484, %v783, 0
      %v877 = vsel %vm484, %v784, 0
      %v880 = vsel %vm484, %v785, 0
      %v883 = vsel %vm484, %v786, 0
      %v886 = vsel %vm484, %v787, 0
      %v889 = vsel %vm484, %v788, 0
      %v892 = vsel %vm484, %v789, 0
      %894 = vmatpush.msra.mxu0 0.0
      %895 = vmatpush.msra.mxu0 0.0
      %896 = vmatpush.msra.mxu0 0.0
      %897 = vmatpush.msra.mxu0 0.0
      %898 = vmatpush.msra.mxu0 0.0
      %899 = vmatpush.msra.mxu0 0.0
      %900 = vmatpush.msra.mxu0 0.0
      %901 = vmatpush.msra.mxu0 0.0
      %902 = vmatpush.msra.mxu0 0.0
      %903 = vmatpush.msra.mxu0 0.0
      %904 = vmatpush.msra.mxu0 0.0
      %905 = vmatpush.msra.mxu0 0.0
      %906 = vmatpush.msra.mxu0 %v793
      %907 = vmatpush.msra.mxu0 %v792
      %908 = vmatpush.msra.mxu0 %v791
      %909 = vmatpush.msra.mxu0 %v790
      %910 = vmatmul.f32.gmra.mxu0 %v799
      %v911 = vpop.f32.mrf.mxu0
      %v912 = vadd.f32 %v796, %v911
      %913 = vmatmul.f32.gmra.mxu0 %v802
      %v914 = vpop.f32.mrf.mxu0
      %v915 = vadd.f32 %v796, %v914
      %916 = vmatmul.f32.gmra.mxu0 %v805
      %v917 = vpop.f32.mrf.mxu0
      %v918 = vadd.f32 %v796, %v917
      %919 = vmatmul.f32.gmra.mxu0 %v808
      %v920 = vpop.f32.mrf.mxu0
      %v921 = vadd.f32 %v796, %v920
      %922 = vmatmul.f32.gmra.mxu0 %v811
      %v923 = vpop.f32.mrf.mxu0
      %v924 = vadd.f32 %v796, %v923
      %925 = vmatmul.f32.gmra.mxu0 %v814
      %v926 = vpop.f32.mrf.mxu0
      %v927 = vadd.f32 %v796, %v926
      %928 = vmatmul.f32.gmra.mxu0 %v817
      %v929 = vpop.f32.mrf.mxu0
      %v930 = vadd.f32 %v796, %v929
      %931 = vmatmul.f32.gmra.mxu0 %v820
      %v932 = vpop.f32.mrf.mxu0
      %v933 = vadd.f32 %v796, %v932
      %934 = vmatmul.f32.gmra.mxu0 %v823
      %v935 = vpop.f32.mrf.mxu0
      %v936 = vadd.f32 %v796, %v935
      %937 = vmatmul.f32.gmra.mxu0 %v826
      %v938 = vpop.f32.mrf.mxu0
      %v939 = vadd.f32 %v796, %v938
      %940 = vmatmul.f32.gmra.mxu0 %v829
      %v941 = vpop.f32.mrf.mxu0
      %v942 = vadd.f32 %v796, %v941
      %943 = vmatmul.f32.gmra.mxu0 %v832
      %v944 = vpop.f32.mrf.mxu0
      %v945 = vadd.f32 %v796, %v944
      %946 = vmatmul.f32.gmra.mxu0 %v835
      %v947 = vpop.f32.mrf.mxu0
      %v948 = vadd.f32 %v796, %v947
      %949 = vmatmul.f32.gmra.mxu0 %v838
      %v950 = vpop.f32.mrf.mxu0
      %v951 = vadd.f32 %v796, %v950
      %952 = vmatmul.f32.gmra.mxu0 %v841
      %v953 = vpop.f32.mrf.mxu0
      %v954 = vadd.f32 %v796, %v953
      %955 = vmatmul.f32.gmra.mxu0 %v844
      %v956 = vpop.f32.mrf.mxu0
      %v957 = vadd.f32 %v796, %v956
      %958 = vmatmul.f32.gmra.mxu0 %v847
      %v959 = vpop.f32.mrf.mxu0
      %v960 = vadd.f32 %v796, %v959
      %961 = vmatmul.f32.gmra.mxu0 %v850
      %v962 = vpop.f32.mrf.mxu0
      %v963 = vadd.f32 %v796, %v962
      %964 = vmatmul.f32.gmra.mxu0 %v853
      %v965 = vpop.f32.mrf.mxu0
      %v966 = vadd.f32 %v796, %v965
      %967 = vmatmul.f32.gmra.mxu0 %v856
      %v968 = vpop.f32.mrf.mxu0
      %v969 = vadd.f32 %v796, %v968
      %970 = vmatmul.f32.gmra.mxu0 %v859
      %v971 = vpop.f32.mrf.mxu0
      %v972 = vadd.f32 %v796, %v971
      %973 = vmatmul.f32.gmra.mxu0 %v862
      %v974 = vpop.f32.mrf.mxu0
      %v975 = vadd.f32 %v796, %v974
      %976 = vmatmul.f32.gmra.mxu0 %v865
      %v977 = vpop.f32.mrf.mxu0
      %v978 = vadd.f32 %v796, %v977
      %979 = vmatmul.f32.gmra.mxu0 %v868
      %v980 = vpop.f32.mrf.mxu0
      %v981 = vadd.f32 %v796, %v980
      %982 = vmatmul.f32.gmra.mxu0 %v871
      %v983 = vpop.f32.mrf.mxu0
      %v984 = vadd.f32 %v796, %v983
      %985 = vmatmul.f32.gmra.mxu0 %v874
      %v986 = vpop.f32.mrf.mxu0
      %v987 = vadd.f32 %v796, %v986
      %988 = vmatmul.f32.gmra.mxu0 %v877
      %v989 = vpop.f32.mrf.mxu0
      %v990 = vadd.f32 %v796, %v989
      %991 = vmatmul.f32.gmra.mxu0 %v880
      %v992 = vpop.f32.mrf.mxu0
      %v993 = vadd.f32 %v796, %v992
      %994 = vmatmul.f32.gmra.mxu0 %v883
      %v995 = vpop.f32.mrf.mxu0
      %v996 = vadd.f32 %v796, %v995
      %997 = vmatmul.f32.gmra.mxu0 %v886
      %v998 = vpop.f32.mrf.mxu0
      %v999 = vadd.f32 %v796, %v998
      %1000 = vmatmul.f32.gmra.mxu0 %v889
      %v1001 = vpop.f32.mrf.mxu0
      %v1002 = vadd.f32 %v796, %v1001
      %1003 = vmatmul.f32.gmra.mxu0 %v892
      %v1004 = vpop.f32.mrf.mxu0
      %v1005 = vadd.f32 %v796, %v1004
      %1006 = vdwg.mxu0
      %vm1007 = vcmp.ge.f32.partialorder %v912, 0.0
      %vm1008 = vcmp.ge.f32.partialorder %v915, 0.0
      %vm1009 = vcmp.ge.f32.partialorder %v918, 0.0
      %vm1010 = vcmp.ge.f32.partialorder %v921, 0.0
      %vm1011 = vcmp.ge.f32.partialorder %v924, 0.0
      %vm1012 = vcmp.ge.f32.partialorder %v927, 0.0
      %vm1013 = vcmp.ge.f32.partialorder %v930, 0.0
      %vm1014 = vcmp.ge.f32.partialorder %v933, 0.0
      %vm1015 = vcmp.ge.f32.partialorder %v936, 0.0
      %vm1016 = vcmp.ge.f32.partialorder %v939, 0.0
      %vm1017 = vcmp.ge.f32.partialorder %v942, 0.0
      %vm1018 = vcmp.ge.f32.partialorder %v945, 0.0
      %vm1019 = vcmp.ge.f32.partialorder %v948, 0.0
      %vm1020 = vcmp.ge.f32.partialorder %v951, 0.0
      %vm1021 = vcmp.ge.f32.partialorder %v954, 0.0
      %vm1022 = vcmp.ge.f32.partialorder %v957, 0.0
      %vm1023 = vcmp.ge.f32.partialorder %v960, 0.0
      %vm1024 = vcmp.ge.f32.partialorder %v963, 0.0
      %vm1025 = vcmp.ge.f32.partialorder %v966, 0.0
      %vm1026 = vcmp.ge.f32.partialorder %v969, 0.0
      %vm1027 = vcmp.ge.f32.partialorder %v972, 0.0
      %vm1028 = vcmp.ge.f32.partialorder %v975, 0.0
      %vm1029 = vcmp.ge.f32.partialorder %v978, 0.0
      %vm1030 = vcmp.ge.f32.partialorder %v981, 0.0
      %vm1031 = vcmp.ge.f32.partialorder %v984, 0.0
      %vm1032 = vcmp.ge.f32.partialorder %v987, 0.0
      %vm1033 = vcmp.ge.f32.partialorder %v990, 0.0
      %vm1034 = vcmp.ge.f32.partialorder %v993, 0.0
      %vm1035 = vcmp.ge.f32.partialorder %v996, 0.0
      %vm1036 = vcmp.ge.f32.partialorder %v999, 0.0
      %vm1037 = vcmp.ge.f32.partialorder %v1002, 0.0
      %vm1038 = vcmp.ge.f32.partialorder %v1005, 0.0
      %v1039 = vmul.f32 %v912, 0.01
      %v1040 = vmul.f32 %v915, 0.01
      %v1041 = vmul.f32 %v918, 0.01
      %v1042 = vmul.f32 %v921, 0.01
      %v1043 = vmul.f32 %v924, 0.01
      %v1044 = vmul.f32 %v927, 0.01
      %v1045 = vmul.f32 %v930, 0.01
      %v1046 = vmul.f32 %v933, 0.01
      %v1047 = vmul.f32 %v936, 0.01
      %v1048 = vmul.f32 %v939, 0.01
      %v1049 = vmul.f32 %v942, 0.01
      %v1050 = vmul.f32 %v945, 0.01
      %v1051 = vmul.f32 %v948, 0.01
      %v1052 = vmul.f32 %v951, 0.01
      %v1053 = vmul.f32 %v954, 0.01
      %v1054 = vmul.f32 %v957, 0.01
      %v1055 = vmul.f32 %v960, 0.01
      %v1056 = vmul.f32 %v963, 0.01
      %v1057 = vmul.f32 %v966, 0.01
      %v1058 = vmul.f32 %v969, 0.01
      %v1059 = vmul.f32 %v972, 0.01
      %v1060 = vmul.f32 %v975, 0.01
      %v1061 = vmul.f32 %v978, 0.01
      %v1062 = vmul.f32 %v981, 0.01
      %v1063 = vmul.f32 %v984, 0.01
      %v1064 = vmul.f32 %v987, 0.01
      %v1065 = vmul.f32 %v990, 0.01
      %v1066 = vmul.f32 %v993, 0.01
      %v1067 = vmul.f32 %v996, 0.01
      %v1068 = vmul.f32 %v999, 0.01
      %v1069 = vmul.f32 %v1002, 0.01
      %v1070 = vmul.f32 %v1005, 0.01
      %v1071 = vsel %vm1007, %v912, %v1039
      %v1072 = vsel %vm1008, %v915, %v1040
      %v1073 = vsel %vm1009, %v918, %v1041
      %v1074 = vsel %vm1010, %v921, %v1042
      %v1075 = vsel %vm1011, %v924, %v1043
      %v1076 = vsel %vm1012, %v927, %v1044
      %v1077 = vsel %vm1013, %v930, %v1045
      %v1078 = vsel %vm1014, %v933, %v1046
      %v1079 = vsel %vm1015, %v936, %v1047
      %v1080 = vsel %vm1016, %v939, %v1048
      %v1081 = vsel %vm1017, %v942, %v1049
      %v1082 = vsel %vm1018, %v945, %v1050
      %v1083 = vsel %vm1019, %v948, %v1051
      %v1084 = vsel %vm1020, %v951, %v1052
      %v1085 = vsel %vm1021, %v954, %v1053
      %v1086 = vsel %vm1022, %v957, %v1054
      %v1087 = vsel %vm1023, %v960, %v1055
      %v1088 = vsel %vm1024, %v963, %v1056
      %v1089 = vsel %vm1025, %v966, %v1057
      %v1090 = vsel %vm1026, %v969, %v1058
      %v1091 = vsel %vm1027, %v972, %v1059
      %v1092 = vsel %vm1028, %v975, %v1060
      %v1093 = vsel %vm1029, %v978, %v1061
      %v1094 = vsel %vm1030, %v981, %v1062
      %v1095 = vsel %vm1031, %v984, %v1063
      %v1096 = vsel %vm1032, %v987, %v1064
      %v1097 = vsel %vm1033, %v990, %v1065
      %v1098 = vsel %vm1034, %v993, %v1066
      %v1099 = vsel %vm1035, %v996, %v1067
      %v1100 = vsel %vm1036, %v999, %v1068
      %v1101 = vsel %vm1037, %v1002, %v1069
      %v1102 = vsel %vm1038, %v1005, %v1070
      %v1103 = vld [vmem:[%s5] sm:$0xff]
      %v1104 = vld [vmem:[%s5 + $0x8] sm:$0xff]
      %v1105 = vld [vmem:[%s5 + $0x10] sm:$0xff]
      %v1106 = vld [vmem:[%s5 + $0x18] sm:$0xff]
      %v1107 = vld [vmem:[%s5 + $0x20] sm:$0xff]
      %v1108 = vld [vmem:[%s5 + $0x28] sm:$0xff]
      %v1109 = vld [vmem:[%s5 + $0x30] sm:$0xff]
      %v1110 = vld [vmem:[%s5 + $0x38] sm:$0xff]
      %v1111 = vld [vmem:[%s5 + $0x40] sm:$0xff]
      %v1112 = vld [vmem:[%s5 + $0x48] sm:$0xff]
      %v1113 = vld [vmem:[%s5 + $0x50] sm:$0xff]
      %v1114 = vld [vmem:[%s5 + $0x58] sm:$0xff]
      %v1115 = vld [vmem:[%s5 + $0x60] sm:$0xff]
      %v1116 = vld [vmem:[%s5 + $0x68] sm:$0xff]
      %v1117 = vld [vmem:[%s5 + $0x70] sm:$0xff]
      %v1118 = vld [vmem:[%s5 + $0x78] sm:$0xff]
      %v1119 = vld [vmem:[%s6] sm:$0x1]
      %v1121 = vperm.slane %v1119, 0
      %1123 = vmatpush.msra.mxu0 %v1118
      %1124 = vmatpush.msra.mxu0 %v1117
      %1125 = vmatpush.msra.mxu0 %v1116
      %1126 = vmatpush.msra.mxu0 %v1115
      %1127 = vmatpush.msra.mxu0 %v1114
      %1128 = vmatpush.msra.mxu0 %v1113
      %1129 = vmatpush.msra.mxu0 %v1112
      %1130 = vmatpush.msra.mxu0 %v1111
      %1131 = vmatpush.msra.mxu0 %v1110
      %1132 = vmatpush.msra.mxu0 %v1109
      %1133 = vmatpush.msra.mxu0 %v1108
      %1134 = vmatpush.msra.mxu0 %v1107
      %1135 = vmatpush.msra.mxu0 %v1106
      %1136 = vmatpush.msra.mxu0 %v1105
      %1137 = vmatpush.msra.mxu0 %v1104
      %1138 = vmatpush.msra.mxu0 %v1103
      %1139 = vmatmul.f32.gmra.mxu0 %v1071
      %v1140 = vpop.f32.mrf.mxu0
      %v1141 = vadd.f32 %v1121, %v1140
      %1142 = vmatmul.f32.gmra.mxu0 %v1072
      %v1143 = vpop.f32.mrf.mxu0
      %v1144 = vadd.f32 %v1121, %v1143
      %1145 = vmatmul.f32.gmra.mxu0 %v1073
      %v1146 = vpop.f32.mrf.mxu0
      %v1147 = vadd.f32 %v1121, %v1146
      %1148 = vmatmul.f32.gmra.mxu0 %v1074
      %v1149 = vpop.f32.mrf.mxu0
      %v1150 = vadd.f32 %v1121, %v1149
      %1151 = vmatmul.f32.gmra.mxu0 %v1075
      %v1152 = vpop.f32.mrf.mxu0
      %v1153 = vadd.f32 %v1121, %v1152
      %1154 = vmatmul.f32.gmra.mxu0 %v1076
      %v1155 = vpop.f32.mrf.mxu0
      %v1156 = vadd.f32 %v1121, %v1155
      %1157 = vmatmul.f32.gmra.mxu0 %v1077
      %v1158 = vpop.f32.mrf.mxu0
      %v1159 = vadd.f32 %v1121, %v1158
      %1160 = vmatmul.f32.gmra.mxu0 %v1078
      %v1161 = vpop.f32.mrf.mxu0
      %v1162 = vadd.f32 %v1121, %v1161
      %1163 = vmatmul.f32.gmra.mxu0 %v1079
      %v1164 = vpop.f32.mrf.mxu0
      %v1165 = vadd.f32 %v1121, %v1164
      %1166 = vmatmul.f32.gmra.mxu0 %v1080
      %v1167 = vpop.f32.mrf.mxu0
      %v1168 = vadd.f32 %v1121, %v1167
      %1169 = vmatmul.f32.gmra.mxu0 %v1081
      %v1170 = vpop.f32.mrf.mxu0
      %v1171 = vadd.f32 %v1121, %v1170
      %1172 = vmatmul.f32.gmra.mxu0 %v1082
      %v1173 = vpop.f32.mrf.mxu0
      %v1174 = vadd.f32 %v1121, %v1173
      %1175 = vmatmul.f32.gmra.mxu0 %v1083
      %v1176 = vpop.f32.mrf.mxu0
      %v1177 = vadd.f32 %v1121, %v1176
      %1178 = vmatmul.f32.gmra.mxu0 %v1084
      %v1179 = vpop.f32.mrf.mxu0
      %v1180 = vadd.f32 %v1121, %v1179
      %1181 = vmatmul.f32.gmra.mxu0 %v1085
      %v1182 = vpop.f32.mrf.mxu0
      %v1183 = vadd.f32 %v1121, %v1182
      %1184 = vmatmul.f32.gmra.mxu0 %v1086
      %v1185 = vpop.f32.mrf.mxu0
      %v1186 = vadd.f32 %v1121, %v1185
      %1187 = vmatmul.f32.gmra.mxu0 %v1087
      %v1188 = vpop.f32.mrf.mxu0
      %v1189 = vadd.f32 %v1121, %v1188
      %1190 = vmatmul.f32.gmra.mxu0 %v1088
      %v1191 = vpop.f32.mrf.mxu0
      %v1192 = vadd.f32 %v1121, %v1191
      %1193 = vmatmul.f32.gmra.mxu0 %v1089
      %v1194 = vpop.f32.mrf.mxu0
      %v1195 = vadd.f32 %v1121, %v1194
      %1196 = vmatmul.f32.gmra.mxu0 %v1090
      %v1197 = vpop.f32.mrf.mxu0
      %v1198 = vadd.f32 %v1121, %v1197
      %1199 = vmatmul.f32.gmra.mxu0 %v1091
      %v1200 = vpop.f32.mrf.mxu0
      %v1201 = vadd.f32 %v1121, %v1200
      %1202 = vmatmul.f32.gmra.mxu0 %v1092
      %v1203 = vpop.f32.mrf.mxu0
      %v1204 = vadd.f32 %v1121, %v1203
      %1205 = vmatmul.f32.gmra.mxu0 %v1093
      %v1206 = vpop.f32.mrf.mxu0
      %v1207 = vadd.f32 %v1121, %v1206
      %1208 = vmatmul.f32.gmra.mxu0 %v1094
      %v1209 = vpop.f32.mrf.mxu0
      %v1210 = vadd.f32 %v1121, %v1209
      %1211 = vmatmul.f32.gmra.mxu0 %v1095
      %v1212 = vpop.f32.mrf.mxu0
      %v1213 = vadd.f32 %v1121, %v1212
      %1214 = vmatmul.f32.gmra.mxu0 %v1096
      %v1215 = vpop.f32.mrf.mxu0
      %v1216 = vadd.f32 %v1121, %v1215
      %1217 = vmatmul.f32.gmra.mxu0 %v1097
      %v1218 = vpop.f32.mrf.mxu0
      %v1219 = vadd.f32 %v1121, %v1218
      %1220 = vmatmul.f32.gmra.mxu0 %v1098
      %v1221 = vpop.f32.mrf.mxu0
      %v1222 = vadd.f32 %v1121, %v1221
      %1223 = vmatmul.f32.gmra.mxu0 %v1099
      %v1224 = vpop.f32.mrf.mxu0
      %v1225 = vadd.f32 %v1121, %v1224
      %1226 = vmatmul.f32.gmra.mxu0 %v1100
      %v1227 = vpop.f32.mrf.mxu0
      %v1228 = vadd.f32 %v1121, %v1227
      %1229 = vmatmul.f32.gmra.mxu0 %v1101
      %v1230 = vpop.f32.mrf.mxu0
      %v1231 = vadd.f32 %v1121, %v1230
      %1232 = vmatmul.f32.gmra.mxu0 %v1102
      %v1233 = vpop.f32.mrf.mxu0
      %v1234 = vadd.f32 %v1121, %v1233
      %1235 = vdwg.mxu0
      %v1236 = vld [vmem:[%s7] sm:$0xff]
      %v1237 = vld [vmem:[%s7 + $0x8] sm:$0xff]
      %v1238 = vld [vmem:[%s7 + $0x10] sm:$0xff]
      %v1239 = vld [vmem:[%s7 + $0x18] sm:$0xff]
      %v1240 = vld [vmem:[%s7 + $0x20] sm:$0xff]
      %v1241 = vld [vmem:[%s7 + $0x28] sm:$0xff]
      %v1242 = vld [vmem:[%s7 + $0x30] sm:$0xff]
      %v1243 = vld [vmem:[%s7 + $0x38] sm:$0xff]
      %v1244 = vld [vmem:[%s7 + $0x40] sm:$0xff]
      %v1245 = vld [vmem:[%s7 + $0x48] sm:$0xff]
      %v1246 = vld [vmem:[%s7 + $0x50] sm:$0xff]
      %v1247 = vld [vmem:[%s7 + $0x58] sm:$0xff]
      %v1248 = vld [vmem:[%s7 + $0x60] sm:$0xff]
      %v1249 = vld [vmem:[%s7 + $0x68] sm:$0xff]
      %v1250 = vld [vmem:[%s7 + $0x70] sm:$0xff]
      %v1251 = vld [vmem:[%s7 + $0x78] sm:$0xff]
      %v1252 = vld [vmem:[%s8] sm:$0x1]
      %v1254 = vperm.slane %v1252, 0
      %1256 = vmatpush.msra.mxu0 %v1251
      %1257 = vmatpush.msra.mxu0 %v1250
      %1258 = vmatpush.msra.mxu0 %v1249
      %1259 = vmatpush.msra.mxu0 %v1248
      %1260 = vmatpush.msra.mxu0 %v1247
      %1261 = vmatpush.msra.mxu0 %v1246
      %1262 = vmatpush.msra.mxu0 %v1245
      %1263 = vmatpush.msra.mxu0 %v1244
      %1264 = vmatpush.msra.mxu0 %v1243
      %1265 = vmatpush.msra.mxu0 %v1242
      %1266 = vmatpush.msra.mxu0 %v1241
      %1267 = vmatpush.msra.mxu0 %v1240
      %1268 = vmatpush.msra.mxu0 %v1239
      %1269 = vmatpush.msra.mxu0 %v1238
      %1270 = vmatpush.msra.mxu0 %v1237
      %1271 = vmatpush.msra.mxu0 %v1236
      %1272 = vmatmul.f32.gmra.mxu0 %v1141
      %v1273 = vpop.f32.mrf.mxu0
      %v1274 = vadd.f32 %v1254, %v1273
      %1275 = vmatmul.f32.gmra.mxu0 %v1144
      %v1276 = vpop.f32.mrf.mxu0
      %v1277 = vadd.f32 %v1254, %v1276
      %1278 = vmatmul.f32.gmra.mxu0 %v1147
      %v1279 = vpop.f32.mrf.mxu0
      %v1280 = vadd.f32 %v1254, %v1279
      %1281 = vmatmul.f32.gmra.mxu0 %v1150
      %v1282 = vpop.f32.mrf.mxu0
      %v1283 = vadd.f32 %v1254, %v1282
      %1284 = vmatmul.f32.gmra.mxu0 %v1153
      %v1285 = vpop.f32.mrf.mxu0
      %v1286 = vadd.f32 %v1254, %v1285
      %1287 = vmatmul.f32.gmra.mxu0 %v1156
      %v1288 = vpop.f32.mrf.mxu0
      %v1289 = vadd.f32 %v1254, %v1288
      %1290 = vmatmul.f32.gmra.mxu0 %v1159
      %v1291 = vpop.f32.mrf.mxu0
      %v1292 = vadd.f32 %v1254, %v1291
      %1293 = vmatmul.f32.gmra.mxu0 %v1162
      %v1294 = vpop.f32.mrf.mxu0
      %v1295 = vadd.f32 %v1254, %v1294
      %1296 = vmatmul.f32.gmra.mxu0 %v1165
      %v1297 = vpop.f32.mrf.mxu0
      %v1298 = vadd.f32 %v1254, %v1297
      %1299 = vmatmul.f32.gmra.mxu0 %v1168
      %v1300 = vpop.f32.mrf.mxu0
      %v1301 = vadd.f32 %v1254, %v1300
      %1302 = vmatmul.f32.gmra.mxu0 %v1171
      %v1303 = vpop.f32.mrf.mxu0
      %v1304 = vadd.f32 %v1254, %v1303
      %1305 = vmatmul.f32.gmra.mxu0 %v1174
      %v1306 = vpop.f32.mrf.mxu0
      %v1307 = vadd.f32 %v1254, %v1306
      %1308 = vmatmul.f32.gmra.mxu0 %v1177
      %v1309 = vpop.f32.mrf.mxu0
      %v1310 = vadd.f32 %v1254, %v1309
      %1311 = vmatmul.f32.gmra.mxu0 %v1180
      %v1312 = vpop.f32.mrf.mxu0
      %v1313 = vadd.f32 %v1254, %v1312
      %1314 = vmatmul.f32.gmra.mxu0 %v1183
      %v1315 = vpop.f32.mrf.mxu0
      %v1316 = vadd.f32 %v1254, %v1315
      %1317 = vmatmul.f32.gmra.mxu0 %v1186
      %v1318 = vpop.f32.mrf.mxu0
      %v1319 = vadd.f32 %v1254, %v1318
      %1320 = vmatmul.f32.gmra.mxu0 %v1189
      %v1321 = vpop.f32.mrf.mxu0
      %v1322 = vadd.f32 %v1254, %v1321
      %1323 = vmatmul.f32.gmra.mxu0 %v1192
      %v1324 = vpop.f32.mrf.mxu0
      %v1325 = vadd.f32 %v1254, %v1324
      %1326 = vmatmul.f32.gmra.mxu0 %v1195
      %v1327 = vpop.f32.mrf.mxu0
      %v1328 = vadd.f32 %v1254, %v1327
      %1329 = vmatmul.f32.gmra.mxu0 %v1198
      %v1330 = vpop.f32.mrf.mxu0
      %v1331 = vadd.f32 %v1254, %v1330
      %1332 = vmatmul.f32.gmra.mxu0 %v1201
      %v1333 = vpop.f32.mrf.mxu0
      %v1334 = vadd.f32 %v1254, %v1333
      %1335 = vmatmul.f32.gmra.mxu0 %v1204
      %v1336 = vpop.f32.mrf.mxu0
      %v1337 = vadd.f32 %v1254, %v1336
      %1338 = vmatmul.f32.gmra.mxu0 %v1207
      %v1339 = vpop.f32.mrf.mxu0
      %v1340 = vadd.f32 %v1254, %v1339
      %1341 = vmatmul.f32.gmra.mxu0 %v1210
      %v1342 = vpop.f32.mrf.mxu0
      %v1343 = vadd.f32 %v1254, %v1342
      %1344 = vmatmul.f32.gmra.mxu0 %v1213
      %v1345 = vpop.f32.mrf.mxu0
      %v1346 = vadd.f32 %v1254, %v1345
      %1347 = vmatmul.f32.gmra.mxu0 %v1216
      %v1348 = vpop.f32.mrf.mxu0
      %v1349 = vadd.f32 %v1254, %v1348
      %1350 = vmatmul.f32.gmra.mxu0 %v1219
      %v1351 = vpop.f32.mrf.mxu0
      %v1352 = vadd.f32 %v1254, %v1351
      %1353 = vmatmul.f32.gmra.mxu0 %v1222
      %v1354 = vpop.f32.mrf.mxu0
      %v1355 = vadd.f32 %v1254, %v1354
      %1356 = vmatmul.f32.gmra.mxu0 %v1225
      %v1357 = vpop.f32.mrf.mxu0
      %v1358 = vadd.f32 %v1254, %v1357
      %1359 = vmatmul.f32.gmra.mxu0 %v1228
      %v1360 = vpop.f32.mrf.mxu0
      %v1361 = vadd.f32 %v1254, %v1360
      %1362 = vmatmul.f32.gmra.mxu0 %v1231
      %v1363 = vpop.f32.mrf.mxu0
      %v1364 = vadd.f32 %v1254, %v1363
      %1365 = vmatmul.f32.gmra.mxu0 %v1234
      %v1366 = vpop.f32.mrf.mxu0
      %v1367 = vadd.f32 %v1254, %v1366
      %1368 = vdwg.mxu0
      %v1369 = vld [vmem:[%s9] sm:$0xff]
      %v1370 = vld [vmem:[%s9 + $0x8] sm:$0xff]
      %v1371 = vld [vmem:[%s9 + $0x10] sm:$0xff]
      %v1372 = vld [vmem:[%s9 + $0x18] sm:$0xff]
      %v1373 = vld [vmem:[%s9 + $0x20] sm:$0xff]
      %v1374 = vld [vmem:[%s9 + $0x28] sm:$0xff]
      %v1375 = vld [vmem:[%s9 + $0x30] sm:$0xff]
      %v1376 = vld [vmem:[%s9 + $0x38] sm:$0xff]
      %v1377 = vld [vmem:[%s9 + $0x40] sm:$0xff]
      %v1378 = vld [vmem:[%s9 + $0x48] sm:$0xff]
      %v1379 = vld [vmem:[%s9 + $0x50] sm:$0xff]
      %v1380 = vld [vmem:[%s9 + $0x58] sm:$0xff]
      %v1381 = vld [vmem:[%s9 + $0x60] sm:$0xff]
      %v1382 = vld [vmem:[%s9 + $0x68] sm:$0xff]
      %v1383 = vld [vmem:[%s9 + $0x70] sm:$0xff]
      %v1384 = vld [vmem:[%s9 + $0x78] sm:$0xff]
      %v1385 = vld [vmem:[%s10] sm:$0x1]
      %v1387 = vperm.slane %v1385, 0
      %1389 = vmatpush.msra.mxu0 %v1384
      %1390 = vmatpush.msra.mxu0 %v1383
      %1391 = vmatpush.msra.mxu0 %v1382
      %1392 = vmatpush.msra.mxu0 %v1381
      %1393 = vmatpush.msra.mxu0 %v1380
      %1394 = vmatpush.msra.mxu0 %v1379
      %1395 = vmatpush.msra.mxu0 %v1378
      %1396 = vmatpush.msra.mxu0 %v1377
      %1397 = vmatpush.msra.mxu0 %v1376
      %1398 = vmatpush.msra.mxu0 %v1375
      %1399 = vmatpush.msra.mxu0 %v1374
      %1400 = vmatpush.msra.mxu0 %v1373
      %1401 = vmatpush.msra.mxu0 %v1372
      %1402 = vmatpush.msra.mxu0 %v1371
      %1403 = vmatpush.msra.mxu0 %v1370
      %1404 = vmatpush.msra.mxu0 %v1369
      %1405 = vmatmul.f32.gmra.mxu0 %v1274
      %v1406 = vpop.f32.mrf.mxu0
      %v1407 = vadd.f32 %v1387, %v1406
      %1408 = vmatmul.f32.gmra.mxu0 %v1277
      %v1409 = vpop.f32.mrf.mxu0
      %v1410 = vadd.f32 %v1387, %v1409
      %1411 = vmatmul.f32.gmra.mxu0 %v1280
      %v1412 = vpop.f32.mrf.mxu0
      %v1413 = vadd.f32 %v1387, %v1412
      %1414 = vmatmul.f32.gmra.mxu0 %v1283
      %v1415 = vpop.f32.mrf.mxu0
      %v1416 = vadd.f32 %v1387, %v1415
      %1417 = vmatmul.f32.gmra.mxu0 %v1286
      %v1418 = vpop.f32.mrf.mxu0
      %v1419 = vadd.f32 %v1387, %v1418
      %1420 = vmatmul.f32.gmra.mxu0 %v1289
      %v1421 = vpop.f32.mrf.mxu0
      %v1422 = vadd.f32 %v1387, %v1421
      %1423 = vmatmul.f32.gmra.mxu0 %v1292
      %v1424 = vpop.f32.mrf.mxu0
      %v1425 = vadd.f32 %v1387, %v1424
      %1426 = vmatmul.f32.gmra.mxu0 %v1295
      %v1427 = vpop.f32.mrf.mxu0
      %v1428 = vadd.f32 %v1387, %v1427
      %1429 = vmatmul.f32.gmra.mxu0 %v1298
      %v1430 = vpop.f32.mrf.mxu0
      %v1431 = vadd.f32 %v1387, %v1430
      %1432 = vmatmul.f32.gmra.mxu0 %v1301
      %v1433 = vpop.f32.mrf.mxu0
      %v1434 = vadd.f32 %v1387, %v1433
      %1435 = vmatmul.f32.gmra.mxu0 %v1304
      %v1436 = vpop.f32.mrf.mxu0
      %v1437 = vadd.f32 %v1387, %v1436
      %1438 = vmatmul.f32.gmra.mxu0 %v1307
      %v1439 = vpop.f32.mrf.mxu0
      %v1440 = vadd.f32 %v1387, %v1439
      %1441 = vmatmul.f32.gmra.mxu0 %v1310
      %v1442 = vpop.f32.mrf.mxu0
      %v1443 = vadd.f32 %v1387, %v1442
      %1444 = vmatmul.f32.gmra.mxu0 %v1313
      %v1445 = vpop.f32.mrf.mxu0
      %v1446 = vadd.f32 %v1387, %v1445
      %1447 = vmatmul.f32.gmra.mxu0 %v1316
      %v1448 = vpop.f32.mrf.mxu0
      %v1449 = vadd.f32 %v1387, %v1448
      %1450 = vmatmul.f32.gmra.mxu0 %v1319
      %v1451 = vpop.f32.mrf.mxu0
      %v1452 = vadd.f32 %v1387, %v1451
      %1453 = vmatmul.f32.gmra.mxu0 %v1322
      %v1454 = vpop.f32.mrf.mxu0
      %v1455 = vadd.f32 %v1387, %v1454
      %1456 = vmatmul.f32.gmra.mxu0 %v1325
      %v1457 = vpop.f32.mrf.mxu0
      %v1458 = vadd.f32 %v1387, %v1457
      %1459 = vmatmul.f32.gmra.mxu0 %v1328
      %v1460 = vpop.f32.mrf.mxu0
      %v1461 = vadd.f32 %v1387, %v1460
      %1462 = vmatmul.f32.gmra.mxu0 %v1331
      %v1463 = vpop.f32.mrf.mxu0
      %v1464 = vadd.f32 %v1387, %v1463
      %1465 = vmatmul.f32.gmra.mxu0 %v1334
      %v1466 = vpop.f32.mrf.mxu0
      %v1467 = vadd.f32 %v1387, %v1466
      %1468 = vmatmul.f32.gmra.mxu0 %v1337
      %v1469 = vpop.f32.mrf.mxu0
      %v1470 = vadd.f32 %v1387, %v1469
      %1471 = vmatmul.f32.gmra.mxu0 %v1340
      %v1472 = vpop.f32.mrf.mxu0
      %v1473 = vadd.f32 %v1387, %v1472
      %1474 = vmatmul.f32.gmra.mxu0 %v1343
      %v1475 = vpop.f32.mrf.mxu0
      %v1476 = vadd.f32 %v1387, %v1475
      %1477 = vmatmul.f32.gmra.mxu0 %v1346
      %v1478 = vpop.f32.mrf.mxu0
      %v1479 = vadd.f32 %v1387, %v1478
      %1480 = vmatmul.f32.gmra.mxu0 %v1349
      %v1481 = vpop.f32.mrf.mxu0
      %v1482 = vadd.f32 %v1387, %v1481
      %1483 = vmatmul.f32.gmra.mxu0 %v1352
      %v1484 = vpop.f32.mrf.mxu0
      %v1485 = vadd.f32 %v1387, %v1484
      %1486 = vmatmul.f32.gmra.mxu0 %v1355
      %v1487 = vpop.f32.mrf.mxu0
      %v1488 = vadd.f32 %v1387, %v1487
      %1489 = vmatmul.f32.gmra.mxu0 %v1358
      %v1490 = vpop.f32.mrf.mxu0
      %v1491 = vadd.f32 %v1387, %v1490
      %1492 = vmatmul.f32.gmra.mxu0 %v1361
      %v1493 = vpop.f32.mrf.mxu0
      %v1494 = vadd.f32 %v1387, %v1493
      %1495 = vmatmul.f32.gmra.mxu0 %v1364
      %v1496 = vpop.f32.mrf.mxu0
      %v1497 = vadd.f32 %v1387, %v1496
      %1498 = vmatmul.f32.gmra.mxu0 %v1367
      %v1499 = vpop.f32.mrf.mxu0
      %v1500 = vadd.f32 %v1387, %v1499
      %1501 = vdwg.mxu0
      %vm1502 = vcmp.ge.f32.partialorder %v1407, 0.0
      %vm1503 = vcmp.ge.f32.partialorder %v1410, 0.0
      %vm1504 = vcmp.ge.f32.partialorder %v1413, 0.0
      %vm1505 = vcmp.ge.f32.partialorder %v1416, 0.0
      %vm1506 = vcmp.ge.f32.partialorder %v1419, 0.0
      %vm1507 = vcmp.ge.f32.partialorder %v1422, 0.0
      %vm1508 = vcmp.ge.f32.partialorder %v1425, 0.0
      %vm1509 = vcmp.ge.f32.partialorder %v1428, 0.0
      %vm1510 = vcmp.ge.f32.partialorder %v1431, 0.0
      %vm1511 = vcmp.ge.f32.partialorder %v1434, 0.0
      %vm1512 = vcmp.ge.f32.partialorder %v1437, 0.0
      %vm1513 = vcmp.ge.f32.partialorder %v1440, 0.0
      %vm1514 = vcmp.ge.f32.partialorder %v1443, 0.0
      %vm1515 = vcmp.ge.f32.partialorder %v1446, 0.0
      %vm1516 = vcmp.ge.f32.partialorder %v1449, 0.0
      %vm1517 = vcmp.ge.f32.partialorder %v1452, 0.0
      %vm1518 = vcmp.ge.f32.partialorder %v1455, 0.0
      %vm1519 = vcmp.ge.f32.partialorder %v1458, 0.0
      %vm1520 = vcmp.ge.f32.partialorder %v1461, 0.0
      %vm1521 = vcmp.ge.f32.partialorder %v1464, 0.0
      %vm1522 = vcmp.ge.f32.partialorder %v1467, 0.0
      %vm1523 = vcmp.ge.f32.partialorder %v1470, 0.0
      %vm1524 = vcmp.ge.f32.partialorder %v1473, 0.0
      %vm1525 = vcmp.ge.f32.partialorder %v1476, 0.0
      %vm1526 = vcmp.ge.f32.partialorder %v1479, 0.0
      %vm1527 = vcmp.ge.f32.partialorder %v1482, 0.0
      %vm1528 = vcmp.ge.f32.partialorder %v1485, 0.0
      %vm1529 = vcmp.ge.f32.partialorder %v1488, 0.0
      %vm1530 = vcmp.ge.f32.partialorder %v1491, 0.0
      %vm1531 = vcmp.ge.f32.partialorder %v1494, 0.0
      %vm1532 = vcmp.ge.f32.partialorder %v1497, 0.0
      %vm1533 = vcmp.ge.f32.partialorder %v1500, 0.0
      %v1534 = vmul.f32 %v1407, 0.01
      %v1535 = vmul.f32 %v1410, 0.01
      %v1536 = vmul.f32 %v1413, 0.01
      %v1537 = vmul.f32 %v1416, 0.01
      %v1538 = vmul.f32 %v1419, 0.01
      %v1539 = vmul.f32 %v1422, 0.01
      %v1540 = vmul.f32 %v1425, 0.01
      %v1541 = vmul.f32 %v1428, 0.01
      %v1542 = vmul.f32 %v1431, 0.01
      %v1543 = vmul.f32 %v1434, 0.01
      %v1544 = vmul.f32 %v1437, 0.01
      %v1545 = vmul.f32 %v1440, 0.01
      %v1546 = vmul.f32 %v1443, 0.01
      %v1547 = vmul.f32 %v1446, 0.01
      %v1548 = vmul.f32 %v1449, 0.01
      %v1549 = vmul.f32 %v1452, 0.01
      %v1550 = vmul.f32 %v1455, 0.01
      %v1551 = vmul.f32 %v1458, 0.01
      %v1552 = vmul.f32 %v1461, 0.01
      %v1553 = vmul.f32 %v1464, 0.01
      %v1554 = vmul.f32 %v1467, 0.01
      %v1555 = vmul.f32 %v1470, 0.01
      %v1556 = vmul.f32 %v1473, 0.01
      %v1557 = vmul.f32 %v1476, 0.01
      %v1558 = vmul.f32 %v1479, 0.01
      %v1559 = vmul.f32 %v1482, 0.01
      %v1560 = vmul.f32 %v1485, 0.01
      %v1561 = vmul.f32 %v1488, 0.01
      %v1562 = vmul.f32 %v1491, 0.01
      %v1563 = vmul.f32 %v1494, 0.01
      %v1564 = vmul.f32 %v1497, 0.01
      %v1565 = vmul.f32 %v1500, 0.01
      %v1566 = vsel %vm1502, %v1407, %v1534
      %v1567 = vsel %vm1503, %v1410, %v1535
      %v1568 = vsel %vm1504, %v1413, %v1536
      %v1569 = vsel %vm1505, %v1416, %v1537
      %v1570 = vsel %vm1506, %v1419, %v1538
      %v1571 = vsel %vm1507, %v1422, %v1539
      %v1572 = vsel %vm1508, %v1425, %v1540
      %v1573 = vsel %vm1509, %v1428, %v1541
      %v1574 = vsel %vm1510, %v1431, %v1542
      %v1575 = vsel %vm1511, %v1434, %v1543
      %v1576 = vsel %vm1512, %v1437, %v1544
      %v1577 = vsel %vm1513, %v1440, %v1545
      %v1578 = vsel %vm1514, %v1443, %v1546
      %v1579 = vsel %vm1515, %v1446, %v1547
      %v1580 = vsel %vm1516, %v1449, %v1548
      %v1581 = vsel %vm1517, %v1452, %v1549
      %v1582 = vsel %vm1518, %v1455, %v1550
      %v1583 = vsel %vm1519, %v1458, %v1551
      %v1584 = vsel %vm1520, %v1461, %v1552
      %v1585 = vsel %vm1521, %v1464, %v1553
      %v1586 = vsel %vm1522, %v1467, %v1554
      %v1587 = vsel %vm1523, %v1470, %v1555
      %v1588 = vsel %vm1524, %v1473, %v1556
      %v1589 = vsel %vm1525, %v1476, %v1557
      %v1590 = vsel %vm1526, %v1479, %v1558
      %v1591 = vsel %vm1527, %v1482, %v1559
      %v1592 = vsel %vm1528, %v1485, %v1560
      %v1593 = vsel %vm1529, %v1488, %v1561
      %v1594 = vsel %vm1530, %v1491, %v1562
      %v1595 = vsel %vm1531, %v1494, %v1563
      %v1596 = vsel %vm1532, %v1497, %v1564
      %v1597 = vsel %vm1533, %v1500, %v1565
      %v1598 = vld [vmem:[%s11] sm:$0xff]
      %v1599 = vld [vmem:[%s11 + $0x8] sm:$0xff]
      %v1600 = vld [vmem:[%s11 + $0x10] sm:$0xff]
      %v1601 = vld [vmem:[%s11 + $0x18] sm:$0xff]
      %v1602 = vld [vmem:[%s11 + $0x20] sm:$0xff]
      %v1603 = vld [vmem:[%s11 + $0x28] sm:$0xff]
      %v1604 = vld [vmem:[%s11 + $0x30] sm:$0xff]
      %v1605 = vld [vmem:[%s11 + $0x38] sm:$0xff]
      %v1606 = vld [vmem:[%s11 + $0x40] sm:$0xff]
      %v1607 = vld [vmem:[%s11 + $0x48] sm:$0xff]
      %v1608 = vld [vmem:[%s11 + $0x50] sm:$0xff]
      %v1609 = vld [vmem:[%s11 + $0x58] sm:$0xff]
      %v1610 = vld [vmem:[%s11 + $0x60] sm:$0xff]
      %v1611 = vld [vmem:[%s11 + $0x68] sm:$0xff]
      %v1612 = vld [vmem:[%s11 + $0x70] sm:$0xff]
      %v1613 = vld [vmem:[%s11 + $0x78] sm:$0xff]
      %v1614 = vld [vmem:[%s12] sm:$0x1]
      %v1616 = vperm.slane %v1614, 0
      %1618 = vmatpush.msra.mxu0 %v1613
      %1619 = vmatpush.msra.mxu0 %v1612
      %1620 = vmatpush.msra.mxu0 %v1611
      %1621 = vmatpush.msra.mxu0 %v1610
      %1622 = vmatpush.msra.mxu0 %v1609
      %1623 = vmatpush.msra.mxu0 %v1608
      %1624 = vmatpush.msra.mxu0 %v1607
      %1625 = vmatpush.msra.mxu0 %v1606
      %1626 = vmatpush.msra.mxu0 %v1605
      %1627 = vmatpush.msra.mxu0 %v1604
      %1628 = vmatpush.msra.mxu0 %v1603
      %1629 = vmatpush.msra.mxu0 %v1602
      %1630 = vmatpush.msra.mxu0 %v1601
      %1631 = vmatpush.msra.mxu0 %v1600
      %1632 = vmatpush.msra.mxu0 %v1599
      %1633 = vmatpush.msra.mxu0 %v1598
      %1634 = vmatmul.f32.gmra.mxu0 %v1566
      %v1635 = vpop.f32.mrf.mxu0
      %v1636 = vadd.f32 %v1616, %v1635
      %1637 = vmatmul.f32.gmra.mxu0 %v1567
      %v1638 = vpop.f32.mrf.mxu0
      %v1639 = vadd.f32 %v1616, %v1638
      %1640 = vmatmul.f32.gmra.mxu0 %v1568
      %v1641 = vpop.f32.mrf.mxu0
      %v1642 = vadd.f32 %v1616, %v1641
      %1643 = vmatmul.f32.gmra.mxu0 %v1569
      %v1644 = vpop.f32.mrf.mxu0
      %v1645 = vadd.f32 %v1616, %v1644
      %1646 = vmatmul.f32.gmra.mxu0 %v1570
      %v1647 = vpop.f32.mrf.mxu0
      %v1648 = vadd.f32 %v1616, %v1647
      %1649 = vmatmul.f32.gmra.mxu0 %v1571
      %v1650 = vpop.f32.mrf.mxu0
      %v1651 = vadd.f32 %v1616, %v1650
      %1652 = vmatmul.f32.gmra.mxu0 %v1572
      %v1653 = vpop.f32.mrf.mxu0
      %v1654 = vadd.f32 %v1616, %v1653
      %1655 = vmatmul.f32.gmra.mxu0 %v1573
      %v1656 = vpop.f32.mrf.mxu0
      %v1657 = vadd.f32 %v1616, %v1656
      %1658 = vmatmul.f32.gmra.mxu0 %v1574
      %v1659 = vpop.f32.mrf.mxu0
      %v1660 = vadd.f32 %v1616, %v1659
      %1661 = vmatmul.f32.gmra.mxu0 %v1575
      %v1662 = vpop.f32.mrf.mxu0
      %v1663 = vadd.f32 %v1616, %v1662
      %1664 = vmatmul.f32.gmra.mxu0 %v1576
      %v1665 = vpop.f32.mrf.mxu0
      %v1666 = vadd.f32 %v1616, %v1665
      %1667 = vmatmul.f32.gmra.mxu0 %v1577
      %v1668 = vpop.f32.mrf.mxu0
      %v1669 = vadd.f32 %v1616, %v1668
      %1670 = vmatmul.f32.gmra.mxu0 %v1578
      %v1671 = vpop.f32.mrf.mxu0
      %v1672 = vadd.f32 %v1616, %v1671
      %1673 = vmatmul.f32.gmra.mxu0 %v1579
      %v1674 = vpop.f32.mrf.mxu0
      %v1675 = vadd.f32 %v1616, %v1674
      %1676 = vmatmul.f32.gmra.mxu0 %v1580
      %v1677 = vpop.f32.mrf.mxu0
      %v1678 = vadd.f32 %v1616, %v1677
      %1679 = vmatmul.f32.gmra.mxu0 %v1581
      %v1680 = vpop.f32.mrf.mxu0
      %v1681 = vadd.f32 %v1616, %v1680
      %1682 = vmatmul.f32.gmra.mxu0 %v1582
      %v1683 = vpop.f32.mrf.mxu0
      %v1684 = vadd.f32 %v1616, %v1683
      %1685 = vmatmul.f32.gmra.mxu0 %v1583
      %v1686 = vpop.f32.mrf.mxu0
      %v1687 = vadd.f32 %v1616, %v1686
      %1688 = vmatmul.f32.gmra.mxu0 %v1584
      %v1689 = vpop.f32.mrf.mxu0
      %v1690 = vadd.f32 %v1616, %v1689
      %1691 = vmatmul.f32.gmra.mxu0 %v1585
      %v1692 = vpop.f32.mrf.mxu0
      %v1693 = vadd.f32 %v1616, %v1692
      %1694 = vmatmul.f32.gmra.mxu0 %v1586
      %v1695 = vpop.f32.mrf.mxu0
      %v1696 = vadd.f32 %v1616, %v1695
      %1697 = vmatmul.f32.gmra.mxu0 %v1587
      %v1698 = vpop.f32.mrf.mxu0
      %v1699 = vadd.f32 %v1616, %v1698
      %1700 = vmatmul.f32.gmra.mxu0 %v1588
      %v1701 = vpop.f32.mrf.mxu0
      %v1702 = vadd.f32 %v1616, %v1701
      %1703 = vmatmul.f32.gmra.mxu0 %v1589
      %v1704 = vpop.f32.mrf.mxu0
      %v1705 = vadd.f32 %v1616, %v1704
      %1706 = vmatmul.f32.gmra.mxu0 %v1590
      %v1707 = vpop.f32.mrf.mxu0
      %v1708 = vadd.f32 %v1616, %v1707
      %1709 = vmatmul.f32.gmra.mxu0 %v1591
      %v1710 = vpop.f32.mrf.mxu0
      %v1711 = vadd.f32 %v1616, %v1710
      %1712 = vmatmul.f32.gmra.mxu0 %v1592
      %v1713 = vpop.f32.mrf.mxu0
      %v1714 = vadd.f32 %v1616, %v1713
      %1715 = vmatmul.f32.gmra.mxu0 %v1593
      %v1716 = vpop.f32.mrf.mxu0
      %v1717 = vadd.f32 %v1616, %v1716
      %1718 = vmatmul.f32.gmra.mxu0 %v1594
      %v1719 = vpop.f32.mrf.mxu0
      %v1720 = vadd.f32 %v1616, %v1719
      %1721 = vmatmul.f32.gmra.mxu0 %v1595
      %v1722 = vpop.f32.mrf.mxu0
      %v1723 = vadd.f32 %v1616, %v1722
      %1724 = vmatmul.f32.gmra.mxu0 %v1596
      %v1725 = vpop.f32.mrf.mxu0
      %v1726 = vadd.f32 %v1616, %v1725
      %1727 = vmatmul.f32.gmra.mxu0 %v1597
      %v1728 = vpop.f32.mrf.mxu0
      %v1729 = vadd.f32 %v1616, %v1728
      %1730 = vdwg.mxu0
      %v1731 = vxor.u32 %v1636, 2147483648
      %v1732 = vxor.u32 %v1639, 2147483648
      %v1733 = vxor.u32 %v1642, 2147483648
      %v1734 = vxor.u32 %v1645, 2147483648
      %v1735 = vxor.u32 %v1648, 2147483648
      %v1736 = vxor.u32 %v1651, 2147483648
      %v1737 = vxor.u32 %v1654, 2147483648
      %v1738 = vxor.u32 %v1657, 2147483648
      %v1739 = vxor.u32 %v1660, 2147483648
      %v1740 = vxor.u32 %v1663, 2147483648
      %v1741 = vxor.u32 %v1666, 2147483648
      %v1742 = vxor.u32 %v1669, 2147483648
      %v1743 = vxor.u32 %v1672, 2147483648
      %v1744 = vxor.u32 %v1675, 2147483648
      %v1745 = vxor.u32 %v1678, 2147483648
      %v1746 = vxor.u32 %v1681, 2147483648
      %v1747 = vxor.u32 %v1684, 2147483648
      %v1748 = vxor.u32 %v1687, 2147483648
      %v1749 = vxor.u32 %v1690, 2147483648
      %v1750 = vxor.u32 %v1693, 2147483648
      %v1751 = vxor.u32 %v1696, 2147483648
      %v1752 = vxor.u32 %v1699, 2147483648
      %v1753 = vxor.u32 %v1702, 2147483648
      %v1754 = vxor.u32 %v1705, 2147483648
      %v1755 = vxor.u32 %v1708, 2147483648
      %v1756 = vxor.u32 %v1711, 2147483648
      %v1757 = vxor.u32 %v1714, 2147483648
      %v1758 = vxor.u32 %v1717, 2147483648
      %v1759 = vxor.u32 %v1720, 2147483648
      %v1760 = vxor.u32 %v1723, 2147483648
      %v1761 = vxor.u32 %v1726, 2147483648
      %v1762 = vxor.u32 %v1729, 2147483648
      %v1763 = vmul.f32 %v1731, 1.442695
      %v1764 = vpow.pop %v1763
      %v1765 = vmul.f32 %v1732, 1.442695
      %v1766 = vpow.pop %v1765
      %v1767 = vmul.f32 %v1733, 1.442695
      %v1768 = vpow.pop %v1767
      %v1769 = vmul.f32 %v1734, 1.442695
      %v1770 = vpow.pop %v1769
      %v1771 = vmul.f32 %v1735, 1.442695
      %v1772 = vpow.pop %v1771
      %v1773 = vmul.f32 %v1736, 1.442695
      %v1774 = vpow.pop %v1773
      %v1775 = vmul.f32 %v1737, 1.442695
      %v1776 = vpow.pop %v1775
      %v1777 = vmul.f32 %v1738, 1.442695
      %v1778 = vpow.pop %v1777
      %v1779 = vmul.f32 %v1739, 1.442695
      %v1780 = vpow.pop %v1779
      %v1781 = vmul.f32 %v1740, 1.442695
      %v1782 = vpow.pop %v1781
      %v1783 = vmul.f32 %v1741, 1.442695
      %v1784 = vpow.pop %v1783
      %v1785 = vmul.f32 %v1742, 1.442695
      %v1786 = vpow.pop %v1785
      %v1787 = vmul.f32 %v1743, 1.442695
      %v1788 = vpow.pop %v1787
      %v1789 = vmul.f32 %v1744, 1.442695
      %v1790 = vpow.pop %v1789
      %v1791 = vmul.f32 %v1745, 1.442695
      %v1792 = vpow.pop %v1791
      %v1793 = vmul.f32 %v1746, 1.442695
      %v1794 = vpow.pop %v1793
      %v1795 = vmul.f32 %v1747, 1.442695
      %v1796 = vpow.pop %v1795
      %v1797 = vmul.f32 %v1748, 1.442695
      %v1798 = vpow.pop %v1797
      %v1799 = vmul.f32 %v1749, 1.442695
      %v1800 = vpow.pop %v1799
      %v1801 = vmul.f32 %v1750, 1.442695
      %v1802 = vpow.pop %v1801
      %v1803 = vmul.f32 %v1751, 1.442695
      %v1804 = vpow.pop %v1803
      %v1805 = vmul.f32 %v1752, 1.442695
      %v1806 = vpow.pop %v1805
      %v1807 = vmul.f32 %v1753, 1.442695
      %v1808 = vpow.pop %v1807
      %v1809 = vmul.f32 %v1754, 1.442695
      %v1810 = vpow.pop %v1809
      %v1811 = vmul.f32 %v1755, 1.442695
      %v1812 = vpow.pop %v1811
      %v1813 = vmul.f32 %v1756, 1.442695
      %v1814 = vpow.pop %v1813
      %v1815 = vmul.f32 %v1757, 1.442695
      %v1816 = vpow.pop %v1815
      %v1817 = vmul.f32 %v1758, 1.442695
      %v1818 = vpow.pop %v1817
      %v1819 = vmul.f32 %v1759, 1.442695
      %v1820 = vpow.pop %v1819
      %v1821 = vmul.f32 %v1760, 1.442695
      %v1822 = vpow.pop %v1821
      %v1823 = vmul.f32 %v1761, 1.442695
      %v1824 = vpow.pop %v1823
      %v1825 = vmul.f32 %v1762, 1.442695
      %v1826 = vpow.pop %v1825
      %v1827 = vadd.f32 %v1764, 1.0
      %v1828 = vadd.f32 %v1766, 1.0
      %v1829 = vadd.f32 %v1768, 1.0
      %v1830 = vadd.f32 %v1770, 1.0
      %v1831 = vadd.f32 %v1772, 1.0
      %v1832 = vadd.f32 %v1774, 1.0
      %v1833 = vadd.f32 %v1776, 1.0
      %v1834 = vadd.f32 %v1778, 1.0
      %v1835 = vadd.f32 %v1780, 1.0
      %v1836 = vadd.f32 %v1782, 1.0
      %v1837 = vadd.f32 %v1784, 1.0
      %v1838 = vadd.f32 %v1786, 1.0
      %v1839 = vadd.f32 %v1788, 1.0
      %v1840 = vadd.f32 %v1790, 1.0
      %v1841 = vadd.f32 %v1792, 1.0
      %v1842 = vadd.f32 %v1794, 1.0
      %v1843 = vadd.f32 %v1796, 1.0
      %v1844 = vadd.f32 %v1798, 1.0
      %v1845 = vadd.f32 %v1800, 1.0
      %v1846 = vadd.f32 %v1802, 1.0
      %v1847 = vadd.f32 %v1804, 1.0
      %v1848 = vadd.f32 %v1806, 1.0
      %v1849 = vadd.f32 %v1808, 1.0
      %v1850 = vadd.f32 %v1810, 1.0
      %v1851 = vadd.f32 %v1812, 1.0
      %v1852 = vadd.f32 %v1814, 1.0
      %v1853 = vadd.f32 %v1816, 1.0
      %v1854 = vadd.f32 %v1818, 1.0
      %v1855 = vadd.f32 %v1820, 1.0
      %v1856 = vadd.f32 %v1822, 1.0
      %v1857 = vadd.f32 %v1824, 1.0
      %v1858 = vadd.f32 %v1826, 1.0
      %v1859 = vrcp.pop %v1827
      %v1860 = vmul.f32 %v1827, %v1859
      %v1861 = vsub.f32 1.0, %v1860
      %v1862 = vmul.f32 %v1859, %v1861
      %v1863 = vadd.f32 %v1859, %v1862
      %vm1864 = vweird.f32 %v1827
      %vm1865 = vweird.f32 %v1859
      %vm1866 = vmor %vm1864, %vm1865
      %v1867 = vsel %vm1866, %v1859, %v1863
      %v1868 = vand.u32 2147483647, %v1827
      %vm1869 = vcmp.eq.f32.partialorder %v1868, 8.507059e+37
      %v1870 = vand.u32 %v1827, 2147483648
      %v1871 = vor.u32 1.1754944e-38, %v1870
      %v1872 = vsel %vm1869, %v1871, %v1867
      %v1873 = vmul.f32 1.0, %v1872
      %v1874 = vrcp.pop %v1828
      %v1875 = vmul.f32 %v1828, %v1874
      %v1876 = vsub.f32 1.0, %v1875
      %v1877 = vmul.f32 %v1874, %v1876
      %v1878 = vadd.f32 %v1874, %v1877
      %vm1879 = vweird.f32 %v1828
      %vm1880 = vweird.f32 %v1874
      %vm1881 = vmor %vm1879, %vm1880
      %v1882 = vsel %vm1881, %v1874, %v1878
      %v1883 = vand.u32 2147483647, %v1828
      %vm1884 = vcmp.eq.f32.partialorder %v1883, 8.507059e+37
      %v1885 = vand.u32 %v1828, 2147483648
      %v1886 = vor.u32 1.1754944e-38, %v1885
      %v1887 = vsel %vm1884, %v1886, %v1882
      %v1888 = vmul.f32 1.0, %v1887
      %v1889 = vrcp.pop %v1829
      %v1890 = vmul.f32 %v1829, %v1889
      %v1891 = vsub.f32 1.0, %v1890
      %v1892 = vmul.f32 %v1889, %v1891
      %v1893 = vadd.f32 %v1889, %v1892
      %vm1894 = vweird.f32 %v1829
      %vm1895 = vweird.f32 %v1889
      %vm1896 = vmor %vm1894, %vm1895
      %v1897 = vsel %vm1896, %v1889, %v1893
      %v1898 = vand.u32 2147483647, %v1829
      %vm1899 = vcmp.eq.f32.partialorder %v1898, 8.507059e+37
      %v1900 = vand.u32 %v1829, 2147483648
      %v1901 = vor.u32 1.1754944e-38, %v1900
      %v1902 = vsel %vm1899, %v1901, %v1897
      %v1903 = vmul.f32 1.0, %v1902
      %v1904 = vrcp.pop %v1830
      %v1905 = vmul.f32 %v1830, %v1904
      %v1906 = vsub.f32 1.0, %v1905
      %v1907 = vmul.f32 %v1904, %v1906
      %v1908 = vadd.f32 %v1904, %v1907
      %vm1909 = vweird.f32 %v1830
      %vm1910 = vweird.f32 %v1904
      %vm1911 = vmor %vm1909, %vm1910
      %v1912 = vsel %vm1911, %v1904, %v1908
      %v1913 = vand.u32 2147483647, %v1830
      %vm1914 = vcmp.eq.f32.partialorder %v1913, 8.507059e+37
      %v1915 = vand.u32 %v1830, 2147483648
      %v1916 = vor.u32 1.1754944e-38, %v1915
      %v1917 = vsel %vm1914, %v1916, %v1912
      %v1918 = vmul.f32 1.0, %v1917
      %v1919 = vrcp.pop %v1831
      %v1920 = vmul.f32 %v1831, %v1919
      %v1921 = vsub.f32 1.0, %v1920
      %v1922 = vmul.f32 %v1919, %v1921
      %v1923 = vadd.f32 %v1919, %v1922
      %vm1924 = vweird.f32 %v1831
      %vm1925 = vweird.f32 %v1919
      %vm1926 = vmor %vm1924, %vm1925
      %v1927 = vsel %vm1926, %v1919, %v1923
      %v1928 = vand.u32 2147483647, %v1831
      %vm1929 = vcmp.eq.f32.partialorder %v1928, 8.507059e+37
      %v1930 = vand.u32 %v1831, 2147483648
      %v1931 = vor.u32 1.1754944e-38, %v1930
      %v1932 = vsel %vm1929, %v1931, %v1927
      %v1933 = vmul.f32 1.0, %v1932
      %v1934 = vrcp.pop %v1832
      %v1935 = vmul.f32 %v1832, %v1934
      %v1936 = vsub.f32 1.0, %v1935
      %v1937 = vmul.f32 %v1934, %v1936
      %v1938 = vadd.f32 %v1934, %v1937
      %vm1939 = vweird.f32 %v1832
      %vm1940 = vweird.f32 %v1934
      %vm1941 = vmor %vm1939, %vm1940
      %v1942 = vsel %vm1941, %v1934, %v1938
      %v1943 = vand.u32 2147483647, %v1832
      %vm1944 = vcmp.eq.f32.partialorder %v1943, 8.507059e+37
      %v1945 = vand.u32 %v1832, 2147483648
      %v1946 = vor.u32 1.1754944e-38, %v1945
      %v1947 = vsel %vm1944, %v1946, %v1942
      %v1948 = vmul.f32 1.0, %v1947
      %v1949 = vrcp.pop %v1833
      %v1950 = vmul.f32 %v1833, %v1949
      %v1951 = vsub.f32 1.0, %v1950
      %v1952 = vmul.f32 %v1949, %v1951
      %v1953 = vadd.f32 %v1949, %v1952
      %vm1954 = vweird.f32 %v1833
      %vm1955 = vweird.f32 %v1949
      %vm1956 = vmor %vm1954, %vm1955
      %v1957 = vsel %vm1956, %v1949, %v1953
      %v1958 = vand.u32 2147483647, %v1833
      %vm1959 = vcmp.eq.f32.partialorder %v1958, 8.507059e+37
      %v1960 = vand.u32 %v1833, 2147483648
      %v1961 = vor.u32 1.1754944e-38, %v1960
      %v1962 = vsel %vm1959, %v1961, %v1957
      %v1963 = vmul.f32 1.0, %v1962
      %v1964 = vrcp.pop %v1834
      %v1965 = vmul.f32 %v1834, %v1964
      %v1966 = vsub.f32 1.0, %v1965
      %v1967 = vmul.f32 %v1964, %v1966
      %v1968 = vadd.f32 %v1964, %v1967
      %vm1969 = vweird.f32 %v1834
      %vm1970 = vweird.f32 %v1964
      %vm1971 = vmor %vm1969, %vm1970
      %v1972 = vsel %vm1971, %v1964, %v1968
      %v1973 = vand.u32 2147483647, %v1834
      %vm1974 = vcmp.eq.f32.partialorder %v1973, 8.507059e+37
      %v1975 = vand.u32 %v1834, 2147483648
      %v1976 = vor.u32 1.1754944e-38, %v1975
      %v1977 = vsel %vm1974, %v1976, %v1972
      %v1978 = vmul.f32 1.0, %v1977
      %v1979 = vrcp.pop %v1835
      %v1980 = vmul.f32 %v1835, %v1979
      %v1981 = vsub.f32 1.0, %v1980
      %v1982 = vmul.f32 %v1979, %v1981
      %v1983 = vadd.f32 %v1979, %v1982
      %vm1984 = vweird.f32 %v1835
      %vm1985 = vweird.f32 %v1979
      %vm1986 = vmor %vm1984, %vm1985
      %v1987 = vsel %vm1986, %v1979, %v1983
      %v1988 = vand.u32 2147483647, %v1835
      %vm1989 = vcmp.eq.f32.partialorder %v1988, 8.507059e+37
      %v1990 = vand.u32 %v1835, 2147483648
      %v1991 = vor.u32 1.1754944e-38, %v1990
      %v1992 = vsel %vm1989, %v1991, %v1987
      %v1993 = vmul.f32 1.0, %v1992
      %v1994 = vrcp.pop %v1836
      %v1995 = vmul.f32 %v1836, %v1994
      %v1996 = vsub.f32 1.0, %v1995
      %v1997 = vmul.f32 %v1994, %v1996
      %v1998 = vadd.f32 %v1994, %v1997
      %vm1999 = vweird.f32 %v1836
      %vm2000 = vweird.f32 %v1994
      %vm2001 = vmor %vm1999, %vm2000
      %v2002 = vsel %vm2001, %v1994, %v1998
      %v2003 = vand.u32 2147483647, %v1836
      %vm2004 = vcmp.eq.f32.partialorder %v2003, 8.507059e+37
      %v2005 = vand.u32 %v1836, 2147483648
      %v2006 = vor.u32 1.1754944e-38, %v2005
      %v2007 = vsel %vm2004, %v2006, %v2002
      %v2008 = vmul.f32 1.0, %v2007
      %v2009 = vrcp.pop %v1837
      %v2010 = vmul.f32 %v1837, %v2009
      %v2011 = vsub.f32 1.0, %v2010
      %v2012 = vmul.f32 %v2009, %v2011
      %v2013 = vadd.f32 %v2009, %v2012
      %vm2014 = vweird.f32 %v1837
      %vm2015 = vweird.f32 %v2009
      %vm2016 = vmor %vm2014, %vm2015
      %v2017 = vsel %vm2016, %v2009, %v2013
      %v2018 = vand.u32 2147483647, %v1837
      %vm2019 = vcmp.eq.f32.partialorder %v2018, 8.507059e+37
      %v2020 = vand.u32 %v1837, 2147483648
      %v2021 = vor.u32 1.1754944e-38, %v2020
      %v2022 = vsel %vm2019, %v2021, %v2017
      %v2023 = vmul.f32 1.0, %v2022
      %v2024 = vrcp.pop %v1838
      %v2025 = vmul.f32 %v1838, %v2024
      %v2026 = vsub.f32 1.0, %v2025
      %v2027 = vmul.f32 %v2024, %v2026
      %v2028 = vadd.f32 %v2024, %v2027
      %vm2029 = vweird.f32 %v1838
      %vm2030 = vweird.f32 %v2024
      %vm2031 = vmor %vm2029, %vm2030
      %v2032 = vsel %vm2031, %v2024, %v2028
      %v2033 = vand.u32 2147483647, %v1838
      %vm2034 = vcmp.eq.f32.partialorder %v2033, 8.507059e+37
      %v2035 = vand.u32 %v1838, 2147483648
      %v2036 = vor.u32 1.1754944e-38, %v2035
      %v2037 = vsel %vm2034, %v2036, %v2032
      %v2038 = vmul.f32 1.0, %v2037
      %v2039 = vrcp.pop %v1839
      %v2040 = vmul.f32 %v1839, %v2039
      %v2041 = vsub.f32 1.0, %v2040
      %v2042 = vmul.f32 %v2039, %v2041
      %v2043 = vadd.f32 %v2039, %v2042
      %vm2044 = vweird.f32 %v1839
      %vm2045 = vweird.f32 %v2039
      %vm2046 = vmor %vm2044, %vm2045
      %v2047 = vsel %vm2046, %v2039, %v2043
      %v2048 = vand.u32 2147483647, %v1839
      %vm2049 = vcmp.eq.f32.partialorder %v2048, 8.507059e+37
      %v2050 = vand.u32 %v1839, 2147483648
      %v2051 = vor.u32 1.1754944e-38, %v2050
      %v2052 = vsel %vm2049, %v2051, %v2047
      %v2053 = vmul.f32 1.0, %v2052
      %v2054 = vrcp.pop %v1840
      %v2055 = vmul.f32 %v1840, %v2054
      %v2056 = vsub.f32 1.0, %v2055
      %v2057 = vmul.f32 %v2054, %v2056
      %v2058 = vadd.f32 %v2054, %v2057
      %vm2059 = vweird.f32 %v1840
      %vm2060 = vweird.f32 %v2054
      %vm2061 = vmor %vm2059, %vm2060
      %v2062 = vsel %vm2061, %v2054, %v2058
      %v2063 = vand.u32 2147483647, %v1840
      %vm2064 = vcmp.eq.f32.partialorder %v2063, 8.507059e+37
      %v2065 = vand.u32 %v1840, 2147483648
      %v2066 = vor.u32 1.1754944e-38, %v2065
      %v2067 = vsel %vm2064, %v2066, %v2062
      %v2068 = vmul.f32 1.0, %v2067
      %v2069 = vrcp.pop %v1841
      %v2070 = vmul.f32 %v1841, %v2069
      %v2071 = vsub.f32 1.0, %v2070
      %v2072 = vmul.f32 %v2069, %v2071
      %v2073 = vadd.f32 %v2069, %v2072
      %vm2074 = vweird.f32 %v1841
      %vm2075 = vweird.f32 %v2069
      %vm2076 = vmor %vm2074, %vm2075
      %v2077 = vsel %vm2076, %v2069, %v2073
      %v2078 = vand.u32 2147483647, %v1841
      %vm2079 = vcmp.eq.f32.partialorder %v2078, 8.507059e+37
      %v2080 = vand.u32 %v1841, 2147483648
      %v2081 = vor.u32 1.1754944e-38, %v2080
      %v2082 = vsel %vm2079, %v2081, %v2077
      %v2083 = vmul.f32 1.0, %v2082
      %v2084 = vrcp.pop %v1842
      %v2085 = vmul.f32 %v1842, %v2084
      %v2086 = vsub.f32 1.0, %v2085
      %v2087 = vmul.f32 %v2084, %v2086
      %v2088 = vadd.f32 %v2084, %v2087
      %vm2089 = vweird.f32 %v1842
      %vm2090 = vweird.f32 %v2084
      %vm2091 = vmor %vm2089, %vm2090
      %v2092 = vsel %vm2091, %v2084, %v2088
      %v2093 = vand.u32 2147483647, %v1842
      %vm2094 = vcmp.eq.f32.partialorder %v2093, 8.507059e+37
      %v2095 = vand.u32 %v1842, 2147483648
      %v2096 = vor.u32 1.1754944e-38, %v2095
      %v2097 = vsel %vm2094, %v2096, %v2092
      %v2098 = vmul.f32 1.0, %v2097
      %v2099 = vrcp.pop %v1843
      %v2100 = vmul.f32 %v1843, %v2099
      %v2101 = vsub.f32 1.0, %v2100
      %v2102 = vmul.f32 %v2099, %v2101
      %v2103 = vadd.f32 %v2099, %v2102
      %vm2104 = vweird.f32 %v1843
      %vm2105 = vweird.f32 %v2099
      %vm2106 = vmor %vm2104, %vm2105
      %v2107 = vsel %vm2106, %v2099, %v2103
      %v2108 = vand.u32 2147483647, %v1843
      %vm2109 = vcmp.eq.f32.partialorder %v2108, 8.507059e+37
      %v2110 = vand.u32 %v1843, 2147483648
      %v2111 = vor.u32 1.1754944e-38, %v2110
      %v2112 = vsel %vm2109, %v2111, %v2107
      %v2113 = vmul.f32 1.0, %v2112
      %v2114 = vrcp.pop %v1844
      %v2115 = vmul.f32 %v1844, %v2114
      %v2116 = vsub.f32 1.0, %v2115
      %v2117 = vmul.f32 %v2114, %v2116
      %v2118 = vadd.f32 %v2114, %v2117
      %vm2119 = vweird.f32 %v1844
      %vm2120 = vweird.f32 %v2114
      %vm2121 = vmor %vm2119, %vm2120
      %v2122 = vsel %vm2121, %v2114, %v2118
      %v2123 = vand.u32 2147483647, %v1844
      %vm2124 = vcmp.eq.f32.partialorder %v2123, 8.507059e+37
      %v2125 = vand.u32 %v1844, 2147483648
      %v2126 = vor.u32 1.1754944e-38, %v2125
      %v2127 = vsel %vm2124, %v2126, %v2122
      %v2128 = vmul.f32 1.0, %v2127
      %v2129 = vrcp.pop %v1845
      %v2130 = vmul.f32 %v1845, %v2129
      %v2131 = vsub.f32 1.0, %v2130
      %v2132 = vmul.f32 %v2129, %v2131
      %v2133 = vadd.f32 %v2129, %v2132
      %vm2134 = vweird.f32 %v1845
      %vm2135 = vweird.f32 %v2129
      %vm2136 = vmor %vm2134, %vm2135
      %v2137 = vsel %vm2136, %v2129, %v2133
      %v2138 = vand.u32 2147483647, %v1845
      %vm2139 = vcmp.eq.f32.partialorder %v2138, 8.507059e+37
      %v2140 = vand.u32 %v1845, 2147483648
      %v2141 = vor.u32 1.1754944e-38, %v2140
      %v2142 = vsel %vm2139, %v2141, %v2137
      %v2143 = vmul.f32 1.0, %v2142
      %v2144 = vrcp.pop %v1846
      %v2145 = vmul.f32 %v1846, %v2144
      %v2146 = vsub.f32 1.0, %v2145
      %v2147 = vmul.f32 %v2144, %v2146
      %v2148 = vadd.f32 %v2144, %v2147
      %vm2149 = vweird.f32 %v1846
      %vm2150 = vweird.f32 %v2144
      %vm2151 = vmor %vm2149, %vm2150
      %v2152 = vsel %vm2151, %v2144, %v2148
      %v2153 = vand.u32 2147483647, %v1846
      %vm2154 = vcmp.eq.f32.partialorder %v2153, 8.507059e+37
      %v2155 = vand.u32 %v1846, 2147483648
      %v2156 = vor.u32 1.1754944e-38, %v2155
      %v2157 = vsel %vm2154, %v2156, %v2152
      %v2158 = vmul.f32 1.0, %v2157
      %v2159 = vrcp.pop %v1847
      %v2160 = vmul.f32 %v1847, %v2159
      %v2161 = vsub.f32 1.0, %v2160
      %v2162 = vmul.f32 %v2159, %v2161
      %v2163 = vadd.f32 %v2159, %v2162
      %vm2164 = vweird.f32 %v1847
      %vm2165 = vweird.f32 %v2159
      %vm2166 = vmor %vm2164, %vm2165
      %v2167 = vsel %vm2166, %v2159, %v2163
      %v2168 = vand.u32 2147483647, %v1847
      %vm2169 = vcmp.eq.f32.partialorder %v2168, 8.507059e+37
      %v2170 = vand.u32 %v1847, 2147483648
      %v2171 = vor.u32 1.1754944e-38, %v2170
      %v2172 = vsel %vm2169, %v2171, %v2167
      %v2173 = vmul.f32 1.0, %v2172
      %v2174 = vrcp.pop %v1848
      %v2175 = vmul.f32 %v1848, %v2174
      %v2176 = vsub.f32 1.0, %v2175
      %v2177 = vmul.f32 %v2174, %v2176
      %v2178 = vadd.f32 %v2174, %v2177
      %vm2179 = vweird.f32 %v1848
      %vm2180 = vweird.f32 %v2174
      %vm2181 = vmor %vm2179, %vm2180
      %v2182 = vsel %vm2181, %v2174, %v2178
      %v2183 = vand.u32 2147483647, %v1848
      %vm2184 = vcmp.eq.f32.partialorder %v2183, 8.507059e+37
      %v2185 = vand.u32 %v1848, 2147483648
      %v2186 = vor.u32 1.1754944e-38, %v2185
      %v2187 = vsel %vm2184, %v2186, %v2182
      %v2188 = vmul.f32 1.0, %v2187
      %v2189 = vrcp.pop %v1849
      %v2190 = vmul.f32 %v1849, %v2189
      %v2191 = vsub.f32 1.0, %v2190
      %v2192 = vmul.f32 %v2189, %v2191
      %v2193 = vadd.f32 %v2189, %v2192
      %vm2194 = vweird.f32 %v1849
      %vm2195 = vweird.f32 %v2189
      %vm2196 = vmor %vm2194, %vm2195
      %v2197 = vsel %vm2196, %v2189, %v2193
      %v2198 = vand.u32 2147483647, %v1849
      %vm2199 = vcmp.eq.f32.partialorder %v2198, 8.507059e+37
      %v2200 = vand.u32 %v1849, 2147483648
      %v2201 = vor.u32 1.1754944e-38, %v2200
      %v2202 = vsel %vm2199, %v2201, %v2197
      %v2203 = vmul.f32 1.0, %v2202
      %v2204 = vrcp.pop %v1850
      %v2205 = vmul.f32 %v1850, %v2204
      %v2206 = vsub.f32 1.0, %v2205
      %v2207 = vmul.f32 %v2204, %v2206
      %v2208 = vadd.f32 %v2204, %v2207
      %vm2209 = vweird.f32 %v1850
      %vm2210 = vweird.f32 %v2204
      %vm2211 = vmor %vm2209, %vm2210
      %v2212 = vsel %vm2211, %v2204, %v2208
      %v2213 = vand.u32 2147483647, %v1850
      %vm2214 = vcmp.eq.f32.partialorder %v2213, 8.507059e+37
      %v2215 = vand.u32 %v1850, 2147483648
      %v2216 = vor.u32 1.1754944e-38, %v2215
      %v2217 = vsel %vm2214, %v2216, %v2212
      %v2218 = vmul.f32 1.0, %v2217
      %v2219 = vrcp.pop %v1851
      %v2220 = vmul.f32 %v1851, %v2219
      %v2221 = vsub.f32 1.0, %v2220
      %v2222 = vmul.f32 %v2219, %v2221
      %v2223 = vadd.f32 %v2219, %v2222
      %vm2224 = vweird.f32 %v1851
      %vm2225 = vweird.f32 %v2219
      %vm2226 = vmor %vm2224, %vm2225
      %v2227 = vsel %vm2226, %v2219, %v2223
      %v2228 = vand.u32 2147483647, %v1851
      %vm2229 = vcmp.eq.f32.partialorder %v2228, 8.507059e+37
      %v2230 = vand.u32 %v1851, 2147483648
      %v2231 = vor.u32 1.1754944e-38, %v2230
      %v2232 = vsel %vm2229, %v2231, %v2227
      %v2233 = vmul.f32 1.0, %v2232
      %v2234 = vrcp.pop %v1852
      %v2235 = vmul.f32 %v1852, %v2234
      %v2236 = vsub.f32 1.0, %v2235
      %v2237 = vmul.f32 %v2234, %v2236
      %v2238 = vadd.f32 %v2234, %v2237
      %vm2239 = vweird.f32 %v1852
      %vm2240 = vweird.f32 %v2234
      %vm2241 = vmor %vm2239, %vm2240
      %v2242 = vsel %vm2241, %v2234, %v2238
      %v2243 = vand.u32 2147483647, %v1852
      %vm2244 = vcmp.eq.f32.partialorder %v2243, 8.507059e+37
      %v2245 = vand.u32 %v1852, 2147483648
      %v2246 = vor.u32 1.1754944e-38, %v2245
      %v2247 = vsel %vm2244, %v2246, %v2242
      %v2248 = vmul.f32 1.0, %v2247
      %v2249 = vrcp.pop %v1853
      %v2250 = vmul.f32 %v1853, %v2249
      %v2251 = vsub.f32 1.0, %v2250
      %v2252 = vmul.f32 %v2249, %v2251
      %v2253 = vadd.f32 %v2249, %v2252
      %vm2254 = vweird.f32 %v1853
      %vm2255 = vweird.f32 %v2249
      %vm2256 = vmor %vm2254, %vm2255
      %v2257 = vsel %vm2256, %v2249, %v2253
      %v2258 = vand.u32 2147483647, %v1853
      %vm2259 = vcmp.eq.f32.partialorder %v2258, 8.507059e+37
      %v2260 = vand.u32 %v1853, 2147483648
      %v2261 = vor.u32 1.1754944e-38, %v2260
      %v2262 = vsel %vm2259, %v2261, %v2257
      %v2263 = vmul.f32 1.0, %v2262
      %v2264 = vrcp.pop %v1854
      %v2265 = vmul.f32 %v1854, %v2264
      %v2266 = vsub.f32 1.0, %v2265
      %v2267 = vmul.f32 %v2264, %v2266
      %v2268 = vadd.f32 %v2264, %v2267
      %vm2269 = vweird.f32 %v1854
      %vm2270 = vweird.f32 %v2264
      %vm2271 = vmor %vm2269, %vm2270
      %v2272 = vsel %vm2271, %v2264, %v2268
      %v2273 = vand.u32 2147483647, %v1854
      %vm2274 = vcmp.eq.f32.partialorder %v2273, 8.507059e+37
      %v2275 = vand.u32 %v1854, 2147483648
      %v2276 = vor.u32 1.1754944e-38, %v2275
      %v2277 = vsel %vm2274, %v2276, %v2272
      %v2278 = vmul.f32 1.0, %v2277
      %v2279 = vrcp.pop %v1855
      %v2280 = vmul.f32 %v1855, %v2279
      %v2281 = vsub.f32 1.0, %v2280
      %v2282 = vmul.f32 %v2279, %v2281
      %v2283 = vadd.f32 %v2279, %v2282
      %vm2284 = vweird.f32 %v1855
      %vm2285 = vweird.f32 %v2279
      %vm2286 = vmor %vm2284, %vm2285
      %v2287 = vsel %vm2286, %v2279, %v2283
      %v2288 = vand.u32 2147483647, %v1855
      %vm2289 = vcmp.eq.f32.partialorder %v2288, 8.507059e+37
      %v2290 = vand.u32 %v1855, 2147483648
      %v2291 = vor.u32 1.1754944e-38, %v2290
      %v2292 = vsel %vm2289, %v2291, %v2287
      %v2293 = vmul.f32 1.0, %v2292
      %v2294 = vrcp.pop %v1856
      %v2295 = vmul.f32 %v1856, %v2294
      %v2296 = vsub.f32 1.0, %v2295
      %v2297 = vmul.f32 %v2294, %v2296
      %v2298 = vadd.f32 %v2294, %v2297
      %vm2299 = vweird.f32 %v1856
      %vm2300 = vweird.f32 %v2294
      %vm2301 = vmor %vm2299, %vm2300
      %v2302 = vsel %vm2301, %v2294, %v2298
      %v2303 = vand.u32 2147483647, %v1856
      %vm2304 = vcmp.eq.f32.partialorder %v2303, 8.507059e+37
      %v2305 = vand.u32 %v1856, 2147483648
      %v2306 = vor.u32 1.1754944e-38, %v2305
      %v2307 = vsel %vm2304, %v2306, %v2302
      %v2308 = vmul.f32 1.0, %v2307
      %v2309 = vrcp.pop %v1857
      %v2310 = vmul.f32 %v1857, %v2309
      %v2311 = vsub.f32 1.0, %v2310
      %v2312 = vmul.f32 %v2309, %v2311
      %v2313 = vadd.f32 %v2309, %v2312
      %vm2314 = vweird.f32 %v1857
      %vm2315 = vweird.f32 %v2309
      %vm2316 = vmor %vm2314, %vm2315
      %v2317 = vsel %vm2316, %v2309, %v2313
      %v2318 = vand.u32 2147483647, %v1857
      %vm2319 = vcmp.eq.f32.partialorder %v2318, 8.507059e+37
      %v2320 = vand.u32 %v1857, 2147483648
      %v2321 = vor.u32 1.1754944e-38, %v2320
      %v2322 = vsel %vm2319, %v2321, %v2317
      %v2323 = vmul.f32 1.0, %v2322
      %v2324 = vrcp.pop %v1858
      %v2325 = vmul.f32 %v1858, %v2324
      %v2326 = vsub.f32 1.0, %v2325
      %v2327 = vmul.f32 %v2324, %v2326
      %v2328 = vadd.f32 %v2324, %v2327
      %vm2329 = vweird.f32 %v1858
      %vm2330 = vweird.f32 %v2324
      %vm2331 = vmor %vm2329, %vm2330
      %v2332 = vsel %vm2331, %v2324, %v2328
      %v2333 = vand.u32 2147483647, %v1858
      %vm2334 = vcmp.eq.f32.partialorder %v2333, 8.507059e+37
      %v2335 = vand.u32 %v1858, 2147483648
      %v2336 = vor.u32 1.1754944e-38, %v2335
      %v2337 = vsel %vm2334, %v2336, %v2332
      %v2338 = vmul.f32 1.0, %v2337
      %vm2339 = vcmask 523264
      %2340 = vst.msk [vmem:[%s442] sm:$0xff] %vm2339, %v1873
      %2341 = vst.msk [vmem:[%s442 + $0x8] sm:$0xff] %vm2339, %v1888
      %2342 = vst.msk [vmem:[%s442 + $0x10] sm:$0xff] %vm2339, %v1903
      %2343 = vst.msk [vmem:[%s442 + $0x18] sm:$0xff] %vm2339, %v1918
      %2344 = vst.msk [vmem:[%s442 + $0x20] sm:$0xff] %vm2339, %v1933
      %2345 = vst.msk [vmem:[%s442 + $0x28] sm:$0xff] %vm2339, %v1948
      %2346 = vst.msk [vmem:[%s442 + $0x30] sm:$0xff] %vm2339, %v1963
      %2347 = vst.msk [vmem:[%s442 + $0x38] sm:$0xff] %vm2339, %v1978
      %2348 = vst.msk [vmem:[%s442 + $0x40] sm:$0xff] %vm2339, %v1993
      %2349 = vst.msk [vmem:[%s442 + $0x48] sm:$0xff] %vm2339, %v2008
      %2350 = vst.msk [vmem:[%s442 + $0x50] sm:$0xff] %vm2339, %v2023
      %2351 = vst.msk [vmem:[%s442 + $0x58] sm:$0xff] %vm2339, %v2038
      %2352 = vst.msk [vmem:[%s442 + $0x60] sm:$0xff] %vm2339, %v2053
      %2353 = vst.msk [vmem:[%s442 + $0x68] sm:$0xff] %vm2339, %v2068
      %2354 = vst.msk [vmem:[%s442 + $0x70] sm:$0xff] %vm2339, %v2083
      %2355 = vst.msk [vmem:[%s442 + $0x78] sm:$0xff] %vm2339, %v2098
      %2356 = vst.msk [vmem:[%s442 + $0x80] sm:$0xff] %vm2339, %v2113
      %2357 = vst.msk [vmem:[%s442 + $0x88] sm:$0xff] %vm2339, %v2128
      %2358 = vst.msk [vmem:[%s442 + $0x90] sm:$0xff] %vm2339, %v2143
      %2359 = vst.msk [vmem:[%s442 + $0x98] sm:$0xff] %vm2339, %v2158
      %2360 = vst.msk [vmem:[%s442 + $0xa0] sm:$0xff] %vm2339, %v2173
      %2361 = vst.msk [vmem:[%s442 + $0xa8] sm:$0xff] %vm2339, %v2188
      %2362 = vst.msk [vmem:[%s442 + $0xb0] sm:$0xff] %vm2339, %v2203
      %2363 = vst.msk [vmem:[%s442 + $0xb8] sm:$0xff] %vm2339, %v2218
      %2364 = vst.msk [vmem:[%s442 + $0xc0] sm:$0xff] %vm2339, %v2233
      %2365 = vst.msk [vmem:[%s442 + $0xc8] sm:$0xff] %vm2339, %v2248
      %2366 = vst.msk [vmem:[%s442 + $0xd0] sm:$0xff] %vm2339, %v2263
      %2367 = vst.msk [vmem:[%s442 + $0xd8] sm:$0xff] %vm2339, %v2278
      %2368 = vst.msk [vmem:[%s442 + $0xe0] sm:$0xff] %vm2339, %v2293
      %2369 = vst.msk [vmem:[%s442 + $0xe8] sm:$0xff] %vm2339, %v2308
      %2370 = vst.msk [vmem:[%s442 + $0xf0] sm:$0xff] %vm2339, %v2323
      %2371 = vst.msk [vmem:[%s442 + $0xf8] sm:$0xff] %vm2339, %v2338
      %s2372 = smul.u32 32, %s24
      %p2373 = scmp.lt.s32.totalorder %s2372, 63
      %s2374 = scalar_select %p2373, %s2372, 63
      %s2375 = smul.addr %s2374, 8
      %s2376 = scalar_lea.vmem %s13, %s2375
      // Predicated region
      $region73: #{tpu_custom_call.1} parent=71 // pred_check
        %p2377 = pneg %p320
      $region74: #{tpu_custom_call.1} parent=71 // pred_check_branch
        %2379 = sbr.rel (%p2377) target = $region76
      $region75: #{tpu_custom_call.1} parent=71 // pred_region
        %s2380 = smul.u32 32, %s24
      $region76: #{tpu_custom_call.1} parent=71 // pred_fallthru
        _
    $region72: #{tpu_custom_call.1} parent=5 // pred_fallthru
      _
    %p2381 = scmp.le.s32.totalorder 2, %s19
    // Predicated region
    $region77: #{tpu_custom_call.1} parent=5 // pred_check
      %p2382 = pneg %p2381
    $region78: #{tpu_custom_call.1} parent=5 // pred_check_branch
      %2384 = sbr.rel (%p2382) target = $region80
    $region79: #{tpu_custom_call.1} parent=5 // pred_region
      %s2385 = ssub.s32 %s19, 2
      // Predicated region
      $region81: #{tpu_custom_call.1} parent=79 // pred_check
        %p2386 = pneg %p326
      $region82: #{tpu_custom_call.1} parent=79 // pred_check_branch
        %2388 = sbr.rel (%p2386) target = $region84
      $region83: #{tpu_custom_call.1} parent=79 // pred_region
        %s2389 = smul.u32 32, %s25
        %p2390 = scmp.lt.s32.totalorder %s2389, 63
        %s2391 = scalar_select %p2390, %s2389, 63
        %s2392 = smul.addr %s2391, 8
        %s2393 = scalar_lea.vmem %s13, %s2392
      $region84: #{tpu_custom_call.1} parent=79 // pred_fallthru
        _
    $region80: #{tpu_custom_call.1} parent=5 // pred_fallthru
      _
  $region6: #{tpu_custom_call.1} parent=0 // loop_footer
    %s23 = sadd.s32 1, %s19
  $region7: #{tpu_custom_call.1} parent=0 // loop_footer_branch
    %18 = sbr.rel target = $region3
  $region8: #{tpu_custom_call.1} parent=0 // loop_exit
    _

</llo_original>
